<compile_context>
chip_gen: v7x
topology: tpu7x:2x2x1
jax: 0.10.0
libtpu: 0.0.40
codegen_flags: <defaults>
</compile_context>

<pallas_src>
import math

import jax
import jax.numpy as jnp
from jax.experimental import pallas as pl
from jax.experimental.pallas import tpu as pltpu

# ---------------- model hyperparameters (small, consistent with the module) ----
BATCH = 2
SEQ_LEN = 8
INPUT_DIM = 4
HIDDEN = 32
OUTPUT_DIM = 1
HORIZON = 12
N_FAN_LAYERS = 3

D_P = HIDDEN // 4              # cos/sin branch width (8)
D_G = HIDDEN - 2 * D_P         # gated branch width   (16)
OUT_W = HORIZON * OUTPUT_DIM   # flattened head width (12)

LANES = 128                    # f32 vreg lane count
HALF_PI = math.pi / 2.0


def _gelu(x):
    # tanh-approx GELU: EUP slot instead of a long VALU erf polynomial.
    c = 0.7978845608028654  # sqrt(2/pi)
    return 0.5 * x * (1.0 + jnp.tanh(c * (x + 0.044715 * x * x * x)))


def forecaster_kernel(xT_ref,                   # (INPUT_DIM, bm)
                      w_inT_ref, b_inT_ref,     # (H, INPUT_DIM), (H, 1)
                      w_fanT_ref, b_fanT_ref,   # (L, H, H), (L, H, 1)  fused [Wp|Wp|Wg]^T
                      w_outT_ref, b_outT_ref,   # (OUT_W, H), (OUT_W, 1)
                      oT_ref):                  # (OUT_W, bm)
    xT = xT_ref[...]

    # input projection + GELU    (batch on lanes -> fully dense vregs)
    h = jnp.dot(w_inT_ref[...], xT, preferred_element_type=jnp.float32) + b_inT_ref[...]
    h = _gelu(h)

    # Hoisted sublane mask: rows [0, 2*D_P) are the trig branch.  The cos rows
    # were turned into sin rows host-side by folding +pi/2 into their bias.
    row = jax.lax.broadcasted_iota(jnp.int32, h.shape, 0)
    trig_mask = row < 2 * D_P

    # FAN layers: one fused MXU dot + one sin/gelu select per layer.
    for l in range(N_FAN_LAYERS):
        z = jnp.dot(w_fanT_ref[l], h, preferred_element_type=jnp.float32) + b_fanT_ref[l]
        h = jnp.where(trig_mask, jnp.sin(z), _gelu(z))

    # output projection: (OUT_W, H) @ (H, bm) -> lane-dense (OUT_W, bm) store.
    out = jnp.dot(w_outT_ref[...], h, preferred_element_type=jnp.float32) + b_outT_ref[...]
    oT_ref[...] = out.astype(oT_ref.dtype)


def _round_up(n, m):
    return ((n + m - 1) // m) * m


def fan_forecaster(x, kparams, *, num_batch_tiles=1):
    """x: (B, SEQ_LEN, INPUT_DIM) float32 -> (B, HORIZON, OUTPUT_DIM).

    num_batch_tiles=1 (default) is best for single-TC chips (v5e/v6e): one grid
    step, zero pipeline overhead.  Pass 2 on v7x with large batches so both
    TensorCores get a lane-dense tile.
    """
    b = x.shape[0]
    x_last_T = x[:, -1, :].T                          # (INPUT_DIM, B) -- XLA layout plumbing

    n_tiles = max(1, int(num_batch_tiles))
    bm = _round_up(pl.cdiv(max(b, 1), n_tiles), LANES)   # lane-dense batch tile
    padded = bm * n_tiles
    if padded != b:
        x_last_T = jnp.pad(x_last_T, ((0, 0), (0, padded - b)))

    grid = (n_tiles,)
    full2d = lambda shape: pl.BlockSpec(shape, lambda i: (0, 0))
    full3d = lambda shape: pl.BlockSpec(shape, lambda i: (0, 0, 0))

    out_T = pl.pallas_call(
        forecaster_kernel,
        out_shape=jax.ShapeDtypeStruct((OUT_W, padded), jnp.float32),
        grid=grid,
        in_specs=[
            pl.BlockSpec((INPUT_DIM, bm), lambda i: (0, i)),     # x^T batch tile
            full2d((HIDDEN, INPUT_DIM)),                         # w_in^T   (resident)
            full2d((HIDDEN, 1)),                                 # b_in^T
            full3d((N_FAN_LAYERS, HIDDEN, HIDDEN)),              # fused fan W^T
            full3d((N_FAN_LAYERS, HIDDEN, 1)),                   # fused fan b^T (pi/2-folded)
            full2d((OUT_W, HIDDEN)),                             # w_out^T
            full2d((OUT_W, 1)),                                  # b_out^T
        ],
        out_specs=pl.BlockSpec((OUT_W, bm), lambda i: (0, i)),
        compiler_params=pltpu.CompilerParams(
            dimension_semantics=("parallel",)),
    )(
        x_last_T,
        kparams["w_inT"], kparams["b_inT"],
        kparams["w_fanT"], kparams["b_fanT"],
        kparams["w_outT"], kparams["b_outT"],
    )
    return out_T[:, :b].T.reshape(b, HORIZON, OUTPUT_DIM)


def init_params(key):
    """Deterministic PyTorch-Linear-style uniform init (values are synthetic)."""
    ks = jax.random.split(key, 8)

    def lin(k, fan_in, shape):
        bound = 1.0 / math.sqrt(fan_in)
        return jax.random.uniform(k, shape, jnp.float32, -bound, bound)

    return {
        "w_in":  lin(ks[0], INPUT_DIM, (INPUT_DIM, HIDDEN)),
        "b_in":  lin(ks[1], INPUT_DIM, (1, HIDDEN)),
        "wp":    lin(ks[2], HIDDEN, (N_FAN_LAYERS, HIDDEN, D_P)),
        "bp":    lin(ks[3], HIDDEN, (N_FAN_LAYERS, 1, D_P)),
        "wg":    lin(ks[4], HIDDEN, (N_FAN_LAYERS, HIDDEN, D_G)),
        "bg":    lin(ks[5], HIDDEN, (N_FAN_LAYERS, 1, D_G)),
        "w_out": lin(ks[6], HIDDEN, (HIDDEN, OUT_W)),
        "b_out": lin(ks[7], HIDDEN, (1, OUT_W)),
    }


def prepare_kernel_params(params):
    """One-time host-side fusion & layout prep.

    * [Wp | Wp | Wg] fused so each FAN layer is a single MXU dot.
    * cos(p) == sin(p + pi/2): fold +pi/2 into the cos rows of the fused bias
      (applied ONLY to the first D_P columns), so the kernel never calls cos.
    * Everything pre-transposed to (features_out, features_in) so the kernel
      runs with batch on the lane axis.
    """
    w_fan = jnp.concatenate([params["wp"], params["wp"], params["wg"]], axis=-1)        # (L,H,H)
    b_fan = jnp.concatenate([params["bp"] + HALF_PI, params["bp"], params["bg"]],
                            axis=-1)                                                    # (L,1,H)
    return {
        "w_inT":  params["w_in"].T,                        # (H, INPUT_DIM)
        "b_inT":  params["b_in"].reshape(HIDDEN, 1),       # (H, 1)
        "w_fanT": jnp.transpose(w_fan, (0, 2, 1)),         # (L, H_out, H_in)
        "b_fanT": jnp.transpose(b_fan, (0, 2, 1)),         # (L, H, 1)
        "w_outT": params["w_out"].T,                       # (OUT_W, H)
        "b_outT": params["b_out"].reshape(OUT_W, 1),       # (OUT_W, 1)
    }


def reference_forward(x, params):
    """Pure-JAX reference of the same forward pass (unfused, cos/sin/concat)."""
    h = _gelu(x[:, -1, :] @ params["w_in"] + params["b_in"])
    for l in range(N_FAN_LAYERS):
        p = h @ params["wp"][l] + params["bp"][l]
        g = _gelu(h @ params["wg"][l] + params["bg"][l])
        h = jnp.concatenate([jnp.cos(p), jnp.sin(p), g], axis=-1)
    out = h @ params["w_out"] + params["b_out"]
    return out.reshape(x.shape[0], HORIZON, OUTPUT_DIM)


if __name__ == "__main__":
    key = jax.random.PRNGKey(0)
    k_x, k_p = jax.random.split(key)
    x = jax.random.normal(k_x, (BATCH, SEQ_LEN, INPUT_DIM), dtype=jnp.float32)
    params = init_params(k_p)
    kparams = prepare_kernel_params(params)

    # Small batch, single grid step (v5e/v6e default).
    y = jax.block_until_ready(fan_forecaster(x, kparams))
    y_ref = reference_forward(x, params)
    assert y.shape == (BATCH, HORIZON, OUTPUT_DIM), y.shape
    err = float(jnp.max(jnp.abs(y - y_ref)))
    assert jnp.allclose(y, y_ref, atol=1e-5, rtol=1e-5), err

    # Larger batch split into two lane-dense tiles (one per v7x TensorCore).
    xb = jax.random.normal(jax.random.PRNGKey(1), (200, SEQ_LEN, INPUT_DIM),
                           dtype=jnp.float32)
    yb = jax.block_until_ready(fan_forecaster(xb, kparams, num_batch_tiles=2))
    yb_ref = reference_forward(xb, params)
    errb = float(jnp.max(jnp.abs(yb - yb_ref)))
    assert jnp.allclose(yb, yb_ref, atol=1e-5, rtol=1e-5), errb

    print("KERNEL_OK")
</pallas_src>

<mosaic_0001>
module attributes {stable_mosaic.version = 11 : i64} {
  func.func @forecaster_kernel(%arg0: i32, %arg1: memref<4x128xf32, #tpu.memory_space<vmem>>, %arg2: memref<32x4xf32, #tpu.memory_space<vmem>>, %arg3: memref<32x1xf32, #tpu.memory_space<vmem>>, %arg4: memref<3x32x32xf32, #tpu.memory_space<vmem>>, %arg5: memref<3x32x1xf32, #tpu.memory_space<vmem>>, %arg6: memref<12x32xf32, #tpu.memory_space<vmem>>, %arg7: memref<12x1xf32, #tpu.memory_space<vmem>>, %arg8: memref<12x128xf32, #tpu.memory_space<vmem>>) attributes {dimension_semantics = [#tpu.dimension_semantics<parallel>], iteration_bounds = array<i64: 1>, scalar_prefetch = 0 : i64, scratch_operands = 0 : i64, tpu.core_type = #tpu.core_type<tc>, window_params = [{transform_indices = @transform_0, window_bounds = array<i64: 4, 128>}, {pipeline_mode = #tpu.pipeline_mode<synchronous>, transform_indices = @transform_1, window_bounds = array<i64: 32, 4>}, {pipeline_mode = #tpu.pipeline_mode<synchronous>, transform_indices = @transform_2, window_bounds = array<i64: 32, 1>}, {pipeline_mode = #tpu.pipeline_mode<synchronous>, transform_indices = @transform_3, window_bounds = array<i64: 3, 32, 32>}, {pipeline_mode = #tpu.pipeline_mode<synchronous>, transform_indices = @transform_4, window_bounds = array<i64: 3, 32, 1>}, {pipeline_mode = #tpu.pipeline_mode<synchronous>, transform_indices = @transform_5, window_bounds = array<i64: 12, 32>}, {pipeline_mode = #tpu.pipeline_mode<synchronous>, transform_indices = @transform_6, window_bounds = array<i64: 12, 1>}, {transform_indices = @transform_7, window_bounds = array<i64: 12, 128>}]} {
    %c0 = arith.constant 0 : index
    %c0_0 = arith.constant 0 : index
    %0 = vector.load %arg1[%c0, %c0_0] : memref<4x128xf32, #tpu.memory_space<vmem>>, vector<4x128xf32>
    %c0_1 = arith.constant 0 : index
    %c0_2 = arith.constant 0 : index
    %1 = vector.load %arg2[%c0_1, %c0_2] : memref<32x4xf32, #tpu.memory_space<vmem>>, vector<32x4xf32>
    %cst = arith.constant dense<0.000000e+00> : vector<32x128xf32>
    %2 = tpu.matmul %1, %0, %cst {dimension_numbers = #tpu.dot_dimension_numbers<[1], [0], [0], [1], [0, 0, 1, 1], [], []>} : vector<32x4xf32>, vector<4x128xf32>, vector<32x128xf32> -> vector<32x128xf32>
    %c0_3 = arith.constant 0 : index
    %c0_4 = arith.constant 0 : index
    %3 = vector.load %arg3[%c0_3, %c0_4] : memref<32x1xf32, #tpu.memory_space<vmem>>, vector<32x1xf32>
    %4 = vector.broadcast %3 : vector<32x1xf32> to vector<32x128xf32>
    %5 = arith.addf %2, %4 : vector<32x128xf32>
    %cst_5 = arith.constant 5.000000e-01 : f32
    %6 = vector.broadcast %cst_5 : f32 to vector<32x128xf32>
    %7 = arith.mulf %6, %5 : vector<32x128xf32>
    %cst_6 = arith.constant 4.471500e-02 : f32
    %8 = vector.broadcast %cst_6 : f32 to vector<32x128xf32>
    %9 = arith.mulf %8, %5 : vector<32x128xf32>
    %10 = arith.mulf %9, %5 : vector<32x128xf32>
    %11 = arith.mulf %10, %5 : vector<32x128xf32>
    %12 = arith.addf %5, %11 : vector<32x128xf32>
    %cst_7 = arith.constant 0.797884583 : f32
    %13 = vector.broadcast %cst_7 : f32 to vector<32x128xf32>
    %14 = arith.mulf %13, %12 : vector<32x128xf32>
    %15 = math.tanh %14 : vector<32x128xf32>
    %cst_8 = arith.constant 1.000000e+00 : f32
    %16 = vector.broadcast %cst_8 : f32 to vector<32x128xf32>
    %17 = arith.addf %16, %15 : vector<32x128xf32>
    %18 = arith.mulf %7, %17 : vector<32x128xf32>
    %19 = tpu.iota {dimensions = array<i32: 0>} : vector<32x128xi32>
    %c16_i32 = arith.constant 16 : i32
    %20 = vector.broadcast %c16_i32 : i32 to vector<32x128xi32>
    %21 = arith.cmpi slt, %19, %20 : vector<32x128xi32>
    %c0_9 = arith.constant 0 : index
    %c0_10 = arith.constant 0 : index
    %c0_11 = arith.constant 0 : index
    %22 = vector.load %arg4[%c0_9, %c0_10, %c0_11] : memref<3x32x32xf32, #tpu.memory_space<vmem>>, vector<1x32x32xf32>
    %23 = vector.shape_cast %22 : vector<1x32x32xf32> to vector<32x32xf32>
    %cst_12 = arith.constant dense<0.000000e+00> : vector<32x128xf32>
    %24 = tpu.matmul %23, %18, %cst_12 {dimension_numbers = #tpu.dot_dimension_numbers<[1], [0], [0], [1], [0, 0, 1, 1], [], []>} : vector<32x32xf32>, vector<32x128xf32>, vector<32x128xf32> -> vector<32x128xf32>
    %c0_13 = arith.constant 0 : index
    %c0_14 = arith.constant 0 : index
    %c0_15 = arith.constant 0 : index
    %25 = vector.load %arg5[%c0_13, %c0_14, %c0_15] : memref<3x32x1xf32, #tpu.memory_space<vmem>>, vector<1x32x1xf32>
    %26 = vector.shape_cast %25 : vector<1x32x1xf32> to vector<32x1xf32>
    %27 = vector.broadcast %26 : vector<32x1xf32> to vector<32x128xf32>
    %28 = arith.addf %24, %27 : vector<32x128xf32>
    %29 = math.sin %28 : vector<32x128xf32>
    %cst_16 = arith.constant 5.000000e-01 : f32
    %30 = vector.broadcast %cst_16 : f32 to vector<32x128xf32>
    %31 = arith.mulf %30, %28 : vector<32x128xf32>
    %cst_17 = arith.constant 4.471500e-02 : f32
    %32 = vector.broadcast %cst_17 : f32 to vector<32x128xf32>
    %33 = arith.mulf %32, %28 : vector<32x128xf32>
    %34 = arith.mulf %33, %28 : vector<32x128xf32>
    %35 = arith.mulf %34, %28 : vector<32x128xf32>
    %36 = arith.addf %28, %35 : vector<32x128xf32>
    %cst_18 = arith.constant 0.797884583 : f32
    %37 = vector.broadcast %cst_18 : f32 to vector<32x128xf32>
    %38 = arith.mulf %37, %36 : vector<32x128xf32>
    %39 = math.tanh %38 : vector<32x128xf32>
    %cst_19 = arith.constant 1.000000e+00 : f32
    %40 = vector.broadcast %cst_19 : f32 to vector<32x128xf32>
    %41 = arith.addf %40, %39 : vector<32x128xf32>
    %42 = arith.mulf %31, %41 : vector<32x128xf32>
    %43 = arith.select %21, %29, %42 : vector<32x128xi1>, vector<32x128xf32>
    %c1 = arith.constant 1 : index
    %c0_20 = arith.constant 0 : index
    %c0_21 = arith.constant 0 : index
    %44 = vector.load %arg4[%c1, %c0_20, %c0_21] : memref<3x32x32xf32, #tpu.memory_space<vmem>>, vector<1x32x32xf32>
    %45 = vector.shape_cast %44 : vector<1x32x32xf32> to vector<32x32xf32>
    %cst_22 = arith.constant dense<0.000000e+00> : vector<32x128xf32>
    %46 = tpu.matmul %45, %43, %cst_22 {dimension_numbers = #tpu.dot_dimension_numbers<[1], [0], [0], [1], [0, 0, 1, 1], [], []>} : vector<32x32xf32>, vector<32x128xf32>, vector<32x128xf32> -> vector<32x128xf32>
    %c1_23 = arith.constant 1 : index
    %c0_24 = arith.constant 0 : index
    %c0_25 = arith.constant 0 : index
    %47 = vector.load %arg5[%c1_23, %c0_24, %c0_25] : memref<3x32x1xf32, #tpu.memory_space<vmem>>, vector<1x32x1xf32>
    %48 = vector.shape_cast %47 : vector<1x32x1xf32> to vector<32x1xf32>
    %49 = vector.broadcast %48 : vector<32x1xf32> to vector<32x128xf32>
    %50 = arith.addf %46, %49 : vector<32x128xf32>
    %51 = math.sin %50 : vector<32x128xf32>
    %cst_26 = arith.constant 5.000000e-01 : f32
    %52 = vector.broadcast %cst_26 : f32 to vector<32x128xf32>
    %53 = arith.mulf %52, %50 : vector<32x128xf32>
    %cst_27 = arith.constant 4.471500e-02 : f32
    %54 = vector.broadcast %cst_27 : f32 to vector<32x128xf32>
    %55 = arith.mulf %54, %50 : vector<32x128xf32>
    %56 = arith.mulf %55, %50 : vector<32x128xf32>
    %57 = arith.mulf %56, %50 : vector<32x128xf32>
    %58 = arith.addf %50, %57 : vector<32x128xf32>
    %cst_28 = arith.constant 0.797884583 : f32
    %59 = vector.broadcast %cst_28 : f32 to vector<32x128xf32>
    %60 = arith.mulf %59, %58 : vector<32x128xf32>
    %61 = math.tanh %60 : vector<32x128xf32>
    %cst_29 = arith.constant 1.000000e+00 : f32
    %62 = vector.broadcast %cst_29 : f32 to vector<32x128xf32>
    %63 = arith.addf %62, %61 : vector<32x128xf32>
    %64 = arith.mulf %53, %63 : vector<32x128xf32>
    %65 = arith.select %21, %51, %64 : vector<32x128xi1>, vector<32x128xf32>
    %c2 = arith.constant 2 : index
    %c0_30 = arith.constant 0 : index
    %c0_31 = arith.constant 0 : index
    %66 = vector.load %arg4[%c2, %c0_30, %c0_31] : memref<3x32x32xf32, #tpu.memory_space<vmem>>, vector<1x32x32xf32>
    %67 = vector.shape_cast %66 : vector<1x32x32xf32> to vector<32x32xf32>
    %cst_32 = arith.constant dense<0.000000e+00> : vector<32x128xf32>
    %68 = tpu.matmul %67, %65, %cst_32 {dimension_numbers = #tpu.dot_dimension_numbers<[1], [0], [0], [1], [0, 0, 1, 1], [], []>} : vector<32x32xf32>, vector<32x128xf32>, vector<32x128xf32> -> vector<32x128xf32>
    %c2_33 = arith.constant 2 : index
    %c0_34 = arith.constant 0 : index
    %c0_35 = arith.constant 0 : index
    %69 = vector.load %arg5[%c2_33, %c0_34, %c0_35] : memref<3x32x1xf32, #tpu.memory_space<vmem>>, vector<1x32x1xf32>
    %70 = vector.shape_cast %69 : vector<1x32x1xf32> to vector<32x1xf32>
    %71 = vector.broadcast %70 : vector<32x1xf32> to vector<32x128xf32>
    %72 = arith.addf %68, %71 : vector<32x128xf32>
    %73 = math.sin %72 : vector<32x128xf32>
    %cst_36 = arith.constant 5.000000e-01 : f32
    %74 = vector.broadcast %cst_36 : f32 to vector<32x128xf32>
    %75 = arith.mulf %74, %72 : vector<32x128xf32>
    %cst_37 = arith.constant 4.471500e-02 : f32
    %76 = vector.broadcast %cst_37 : f32 to vector<32x128xf32>
    %77 = arith.mulf %76, %72 : vector<32x128xf32>
    %78 = arith.mulf %77, %72 : vector<32x128xf32>
    %79 = arith.mulf %78, %72 : vector<32x128xf32>
    %80 = arith.addf %72, %79 : vector<32x128xf32>
    %cst_38 = arith.constant 0.797884583 : f32
    %81 = vector.broadcast %cst_38 : f32 to vector<32x128xf32>
    %82 = arith.mulf %81, %80 : vector<32x128xf32>
    %83 = math.tanh %82 : vector<32x128xf32>
    %cst_39 = arith.constant 1.000000e+00 : f32
    %84 = vector.broadcast %cst_39 : f32 to vector<32x128xf32>
    %85 = arith.addf %84, %83 : vector<32x128xf32>
    %86 = arith.mulf %75, %85 : vector<32x128xf32>
    %87 = arith.select %21, %73, %86 : vector<32x128xi1>, vector<32x128xf32>
    %c0_40 = arith.constant 0 : index
    %c0_41 = arith.constant 0 : index
    %88 = vector.load %arg6[%c0_40, %c0_41] : memref<12x32xf32, #tpu.memory_space<vmem>>, vector<12x32xf32>
    %cst_42 = arith.constant dense<0.000000e+00> : vector<12x128xf32>
    %89 = tpu.matmul %88, %87, %cst_42 {dimension_numbers = #tpu.dot_dimension_numbers<[1], [0], [0], [1], [0, 0, 1, 1], [], []>} : vector<12x32xf32>, vector<32x128xf32>, vector<12x128xf32> -> vector<12x128xf32>
    %c0_43 = arith.constant 0 : index
    %c0_44 = arith.constant 0 : index
    %90 = vector.load %arg7[%c0_43, %c0_44] : memref<12x1xf32, #tpu.memory_space<vmem>>, vector<12x1xf32>
    %91 = vector.broadcast %90 : vector<12x1xf32> to vector<12x128xf32>
    %92 = arith.addf %89, %91 : vector<12x128xf32>
    %c0_45 = arith.constant 0 : index
    %c0_46 = arith.constant 0 : index
    %93 = vector.load %arg8[%c0_45, %c0_46] : memref<12x128xf32, #tpu.memory_space<vmem>>, vector<12x128xf32>
    tpu.vector_store %arg8[%c0_45, %c0_46], %92 {strides = array<i32>} : memref<12x128xf32, #tpu.memory_space<vmem>>, vector<12x128xf32>,
    return
  }
  func.func @transform_0(%arg0: i32) -> (i32, i32) {
    %c0_i32 = arith.constant 0 : i32
    %c0_i32_0 = arith.constant 0 : i32
    return %c0_i32, %arg0 : i32, i32
  }
  func.func @transform_1(%arg0: i32) -> (i32, i32) {
    %c0_i32 = arith.constant 0 : i32
    %c0_i32_0 = arith.constant 0 : i32
    %c0_i32_1 = arith.constant 0 : i32
    return %c0_i32, %c0_i32_0 : i32, i32
  }
  func.func @transform_2(%arg0: i32) -> (i32, i32) {
    %c0_i32 = arith.constant 0 : i32
    %c0_i32_0 = arith.constant 0 : i32
    %c0_i32_1 = arith.constant 0 : i32
    return %c0_i32, %c0_i32_0 : i32, i32
  }
  func.func @transform_3(%arg0: i32) -> (i32, i32, i32) {
    %c0_i32 = arith.constant 0 : i32
    %c0_i32_0 = arith.constant 0 : i32
    %c0_i32_1 = arith.constant 0 : i32
    %c0_i32_2 = arith.constant 0 : i32
    return %c0_i32, %c0_i32_0, %c0_i32_1 : i32, i32, i32
  }
  func.func @transform_4(%arg0: i32) -> (i32, i32, i32) {
    %c0_i32 = arith.constant 0 : i32
    %c0_i32_0 = arith.constant 0 : i32
    %c0_i32_1 = arith.constant 0 : i32
    %c0_i32_2 = arith.constant 0 : i32
    return %c0_i32, %c0_i32_0, %c0_i32_1 : i32, i32, i32
  }
  func.func @transform_5(%arg0: i32) -> (i32, i32) {
    %c0_i32 = arith.constant 0 : i32
    %c0_i32_0 = arith.constant 0 : i32
    %c0_i32_1 = arith.constant 0 : i32
    return %c0_i32, %c0_i32_0 : i32, i32
  }
  func.func @transform_6(%arg0: i32) -> (i32, i32) {
    %c0_i32 = arith.constant 0 : i32
    %c0_i32_0 = arith.constant 0 : i32
    %c0_i32_1 = arith.constant 0 : i32
    return %c0_i32, %c0_i32_0 : i32, i32
  }
  func.func @transform_7(%arg0: i32) -> (i32, i32) {
    %c0_i32 = arith.constant 0 : i32
    %c0_i32_0 = arith.constant 0 : i32
    return %c0_i32, %arg0 : i32, i32
  }
}

</mosaic_0001>

<llo_original>
// kernel: tpu_custom_call.1
$region0: #{tpu_custom_call.1}
  #allocation0 [shape = 'u32[]', space=smem, size = 0x4, offset = 0x4, fixed_abs, tag = 'smem constant byte address 0x4 - core index']
  #allocation1 [shape = 'u32[144,128]{1,0:T(1,128)}', space=vmem, size = 0x12000, scoped, tag = 'internal scratch']
  %s0 = inlined_call_operand.vmem [shape: f32[4,128], index: 0, kind: input, shape index: {}]
  %s1 = inlined_call_operand.vmem [shape: f32[32,4], index: 1, kind: input, shape index: {}]
  %s2 = inlined_call_operand.vmem [shape: f32[32,1], index: 2, kind: input, shape index: {}]
  %s3 = inlined_call_operand.vmem [shape: f32[3,32,32], index: 3, kind: input, shape index: {}]
  %s4 = inlined_call_operand.vmem [shape: f32[3,32,1], index: 4, kind: input, shape index: {}]
  %s5 = inlined_call_operand.vmem [shape: f32[12,32], index: 5, kind: input, shape index: {}]
  %s6 = inlined_call_operand.vmem [shape: f32[12,1], index: 6, kind: input, shape index: {}]
  %s7 = inlined_call_operand.hbm [shape: f32[12,128], index: 7, kind: output, shape index: {}]
  %s8 = sld [smem:[#allocation0]]
  $region38: #{tpu_custom_call.1} parent=0
    _
  %s10 = ssub.s32 1, %s8
  %s11 = scalar_select 0, %s10, %s8
  $region1: #{tpu_custom_call.1} parent=0
    #allocation2 [shape = 'u8[8192]{0}', space=vmem, size = 0x2000, scoped, tag = 'output window, operand 0, single buffered']
    #allocation3 [shape = 's32[1]{0}', space=sflag, size = 0x4, scoped, tag = 'scoped memory for tpu_custom_call.1']
    %12 = vsyncpa [#allocation3], 0
    // Predicated region
    $region2: #{tpu_custom_call.1} parent=1 // pred_check
      _
    $region3: #{tpu_custom_call.1} parent=1 // pred_check_branch
      %14 = sbr.rel (0) target = $region5
    $region4: #{tpu_custom_call.1} parent=1 // pred_region
      _
    $region5: #{tpu_custom_call.1} parent=1 // pred_fallthru
      _
    // Predicated region
    $region6: #{tpu_custom_call.1} parent=1 // pred_check
      _
    $region7: #{tpu_custom_call.1} parent=1 // pred_check_branch
      %16 = sbr.rel (0) target = $region9
    $region8: #{tpu_custom_call.1} parent=1 // pred_region
      _
    $region9: #{tpu_custom_call.1} parent=1 // pred_fallthru
      _
    // Predicated region
    $region10: #{tpu_custom_call.1} parent=1 // pred_check
      _
    $region11: #{tpu_custom_call.1} parent=1 // pred_check_branch
      %18 = sbr.rel (0) target = $region13
    $region12: #{tpu_custom_call.1} parent=1 // pred_region
      _
    $region13: #{tpu_custom_call.1} parent=1 // pred_fallthru
      _
    // Predicated region
    $region14: #{tpu_custom_call.1} parent=1 // pred_check
      _
    $region15: #{tpu_custom_call.1} parent=1 // pred_check_branch
      %20 = sbr.rel (0) target = $region17
    $region16: #{tpu_custom_call.1} parent=1 // pred_region
      _
    $region17: #{tpu_custom_call.1} parent=1 // pred_fallthru
      _
    // Predicated region
    $region18: #{tpu_custom_call.1} parent=1 // pred_check
      _
    $region19: #{tpu_custom_call.1} parent=1 // pred_check_branch
      %22 = sbr.rel (0) target = $region21
    $region20: #{tpu_custom_call.1} parent=1 // pred_region
      _
    $region21: #{tpu_custom_call.1} parent=1 // pred_fallthru
      _
    // Predicated region
    $region22: #{tpu_custom_call.1} parent=1 // pred_check
      _
    $region23: #{tpu_custom_call.1} parent=1 // pred_check_branch
      %24 = sbr.rel (0) target = $region25
    $region24: #{tpu_custom_call.1} parent=1 // pred_region
      _
    $region25: #{tpu_custom_call.1} parent=1 // pred_fallthru
      _
    // Predicated region
    $region26: #{tpu_custom_call.1} parent=1 // pred_check
      _
    $region27: #{tpu_custom_call.1} parent=1 // pred_check_branch
      %26 = sbr.rel (0) target = $region29
    $region28: #{tpu_custom_call.1} parent=1 // pred_region
      _
    $region29: #{tpu_custom_call.1} parent=1 // pred_fallthru
      _
    %v27 = vld [vmem:[%s0] sm:$0xf]
    %v28 = vld [vmem:[%s1] sm:$0xff]
    %v29 = vld [vmem:[%s1 + $0x8] sm:$0xff]
    %v30 = vld [vmem:[%s1 + $0x10] sm:$0xff]
    %v31 = vld [vmem:[%s1 + $0x18] sm:$0xff]
    %v32 = vld [vmem:[%s2] sm:$0xff]
    %v33 = vld [vmem:[%s2 + $0x8] sm:$0xff]
    %v34 = vld [vmem:[%s2 + $0x10] sm:$0xff]
    %v35 = vld [vmem:[%s2 + $0x18] sm:$0xff]
    %37 = vset.pattern.permute.xlu0 0
    %38 = vperm.xlu0 %37, %v32
    %v39 = vpop.permute.xlu0 %38
    %42 = vset.pattern.permute.xlu0 0
    %43 = vperm.xlu0 %42, %v33
    %v44 = vpop.permute.xlu0 %43
    %47 = vset.pattern.permute.xlu0 0
    %48 = vperm.xlu0 %47, %v34
    %v49 = vpop.permute.xlu0 %48
    %52 = vset.pattern.permute.xlu0 0
    %53 = vperm.xlu0 %52, %v35
    %v54 = vpop.permute.xlu0 %53
    %vm56 = vcmask 31744
    %v58 = vsel %vm56, %v28, 0
    %v61 = vsel %vm56, %v29, 0
    %v64 = vsel %vm56, %v30, 0
    %v67 = vsel %vm56, %v31, 0
    %vm69 = vcmask 1043456
    %v71 = vsel %vm69, %v27, 0
    %73 = vmatprep.subr.mxu0 0.0
    %74 = vmatpush1.msra.mxu0 %v71
    %75 = vmatprep.subr.mxu0 0.0
    %76 = vmatpush1.msra.mxu0 0.0
    %77 = vmatprep.subr.mxu0 0.0
    %78 = vmatpush1.msra.mxu0 0.0
    %79 = vmatprep.subr.mxu0 0.0
    %80 = vmatpush1.msra.mxu0 0.0
    %81 = vmatprep.subr.mxu0 0.0
    %82 = vmatpush1.msra.mxu0 0.0
    %83 = vmatprep.subr.mxu0 0.0
    %84 = vmatpush1.msra.mxu0 0.0
    %85 = vmatprep.subr.mxu0 0.0
    %86 = vmatpush1.msra.mxu0 0.0
    %87 = vmatprep.subr.mxu0 0.0
    %88 = vmatpush1.msra.mxu0 0.0
    %89 = vmatprep.subr.mxu0 0.0
    %90 = vmatpush1.msra.mxu0 0.0
    %91 = vmatprep.subr.mxu0 0.0
    %92 = vmatpush1.msra.mxu0 0.0
    %93 = vmatprep.subr.mxu0 0.0
    %94 = vmatpush1.msra.mxu0 0.0
    %95 = vmatprep.subr.mxu0 0.0
    %96 = vmatpush1.msra.mxu0 0.0
    %97 = vmatprep.subr.mxu0 0.0
    %98 = vmatpush1.msra.mxu0 0.0
    %99 = vmatprep.subr.mxu0 0.0
    %100 = vmatpush1.msra.mxu0 0.0
    %101 = vmatprep.subr.mxu0 0.0
    %102 = vmatpush1.msra.mxu0 0.0
    %103 = vmatprep.subr.mxu0 0.0
    %104 = vmatpush1.msra.mxu0 0.0
    %105 = vmatprep.subr.mxu0 0.0
    %106 = vmatpush1.msra.mxu0 0.0
    %107 = vmatprep.subr.mxu0 0.0
    %108 = vmatpush1.msra.mxu0 0.0
    %109 = vmatprep.subr.mxu0 0.0
    %110 = vmatpush1.msra.mxu0 0.0
    %111 = vmatprep.subr.mxu0 0.0
    %112 = vmatpush1.msra.mxu0 0.0
    %113 = vmatprep.subr.mxu0 0.0
    %114 = vmatpush1.msra.mxu0 0.0
    %115 = vmatprep.subr.mxu0 0.0
    %116 = vmatpush1.msra.mxu0 0.0
    %117 = vmatprep.subr.mxu0 0.0
    %118 = vmatpush1.msra.mxu0 0.0
    %119 = vmatprep.subr.mxu0 0.0
    %120 = vmatpush1.msra.mxu0 0.0
    %121 = vmatprep.subr.mxu0 0.0
    %122 = vmatpush1.msra.mxu0 0.0
    %123 = vmatprep.subr.mxu0 0.0
    %124 = vmatpush1.msra.mxu0 0.0
    %125 = vmatprep.subr.mxu0 0.0
    %126 = vmatpush1.msra.mxu0 0.0
    %127 = vmatprep.subr.mxu0 0.0
    %128 = vmatpush1.msra.mxu0 0.0
    %129 = vmatprep.subr.mxu0 0.0
    %130 = vmatpush1.msra.mxu0 0.0
    %131 = vmatprep.subr.mxu0 0.0
    %132 = vmatpush1.msra.mxu0 0.0
    %133 = vmatprep.subr.mxu0 0.0
    %134 = vmatpush1.msra.mxu0 0.0
    %135 = vmatprep.subr.mxu0 0.0
    %136 = vmatpush1.msra.mxu0 0.0
    %137 = vmatprep.mubr.f32.mxu0 0.0
    %138 = vmatmul.mubr.f32.gmra.mrb[0].mxu0 %v58
    %v139 = vpop.f32.mrb[0].mxu0
    %v140 = vadd.f32 %v39, %v139
    %v141 = vpop.f32.mrb[0].mxu0
    %142 = vmatprep.mubr.f32.mxu0 0.0
    %143 = vmatmul.mubr.f32.gmra.mrb[0].mxu0 %v61
    %v144 = vpop.f32.mrb[0].mxu0
    %v145 = vadd.f32 %v44, %v144
    %v146 = vpop.f32.mrb[0].mxu0
    %147 = vmatprep.mubr.f32.mxu0 0.0
    %148 = vmatmul.mubr.f32.gmra.mrb[0].mxu0 %v64
    %v149 = vpop.f32.mrb[0].mxu0
    %v150 = vadd.f32 %v49, %v149
    %v151 = vpop.f32.mrb[0].mxu0
    %152 = vmatprep.mubr.f32.mxu0 0.0
    %153 = vmatmul.mubr.f32.gmra.mrb[0].mxu0 %v67
    %v154 = vpop.f32.mrb[0].mxu0
    %v155 = vadd.f32 %v54, %v154
    %v156 = vpop.f32.mrb[0].mxu0
    %157 = vdwg.mxu0
    %v158 = vmul.f32 %v140, 0.5
    %v159 = vmul.f32 %v145, 0.5
    %v160 = vmul.f32 %v150, 0.5
    %v161 = vmul.f32 %v155, 0.5
    %v162 = vmul.f32 %v140, 0.044715
    %v163 = vmul.f32 %v145, 0.044715
    %v164 = vmul.f32 %v150, 0.044715
    %v165 = vmul.f32 %v155, 0.044715
    %v166 = vmul.f32 %v162, %v140
    %v167 = vmul.f32 %v163, %v145
    %v168 = vmul.f32 %v164, %v150
    %v169 = vmul.f32 %v165, %v155
    %v170 = vmul.f32 %v166, %v140
    %v171 = vmul.f32 %v167, %v145
    %v172 = vmul.f32 %v168, %v150
    %v173 = vmul.f32 %v169, %v155
    %v174 = vadd.f32 %v140, %v170
    %v175 = vadd.f32 %v145, %v171
    %v176 = vadd.f32 %v150, %v172
    %v177 = vadd.f32 %v155, %v173
    %v178 = vmul.f32 %v174, 0.7978846
    %v179 = vmul.f32 %v175, 0.7978846
    %v180 = vmul.f32 %v176, 0.7978846
    %v181 = vmul.f32 %v177, 0.7978846
    %v182 = vtanh.pop %v178
    %v183 = vtanh.pop %v179
    %v184 = vtanh.pop %v180
    %v185 = vtanh.pop %v181
    %v186 = vadd.f32 %v182, 1.0
    %v187 = vadd.f32 %v183, 1.0
    %v188 = vadd.f32 %v184, 1.0
    %v189 = vadd.f32 %v185, 1.0
    %v190 = vmul.f32 %v158, %v186
    %v191 = vmul.f32 %v159, %v187
    %v192 = vmul.f32 %v160, %v188
    %v193 = vmul.f32 %v161, %v189
    %v194 = vlaneseq
    %v195 = vshrl.u32 %v194, 7
    %v196 = vadd.s32 %v195, 8
    %v197 = vadd.s32 %v195, 16
    %v198 = vadd.s32 %v195, 24
    %vm199 = vcmp.lt.s32.totalorder %v195, 16
    %vm200 = vcmp.lt.s32.totalorder %v196, 16
    %vm201 = vcmp.lt.s32.totalorder %v197, 16
    %vm202 = vcmp.lt.s32.totalorder %v198, 16
    %v203 = vld [vmem:[%s3] sm:$0xff]
    %v204 = vld [vmem:[%s3 + $0x8] sm:$0xff]
    %v205 = vld [vmem:[%s3 + $0x10] sm:$0xff]
    %v206 = vld [vmem:[%s3 + $0x18] sm:$0xff]
    %v207 = vld [vmem:[%s4] sm:$0xff]
    %v208 = vld [vmem:[%s4 + $0x8] sm:$0xff]
    %v209 = vld [vmem:[%s4 + $0x10] sm:$0xff]
    %v210 = vld [vmem:[%s4 + $0x18] sm:$0xff]
    %212 = vset.pattern.permute.xlu0 0
    %213 = vperm.xlu0 %212, %v207
    %v214 = vpop.permute.xlu0 %213
    %217 = vset.pattern.permute.xlu0 0
    %218 = vperm.xlu0 %217, %v208
    %v219 = vpop.permute.xlu0 %218
    %222 = vset.pattern.permute.xlu0 0
    %223 = vperm.xlu0 %222, %v209
    %v224 = vpop.permute.xlu0 %223
    %227 = vset.pattern.permute.xlu0 0
    %228 = vperm.xlu0 %227, %v210
    %v229 = vpop.permute.xlu0 %228
    %vm231 = vcmask 261120
    %v233 = vsel %vm231, %v203, 0
    %v236 = vsel %vm231, %v204, 0
    %v239 = vsel %vm231, %v205, 0
    %v242 = vsel %vm231, %v206, 0
    %244 = vmatprep.subr.mxu0 0.0
    %245 = vmatpush1.msra.mxu0 %v190
    %246 = vmatprep.subr.mxu0 0.0
    %247 = vmatpush1.msra.mxu0 %v191
    %248 = vmatprep.subr.mxu0 0.0
    %249 = vmatpush1.msra.mxu0 %v192
    %250 = vmatprep.subr.mxu0 0.0
    %251 = vmatpush1.msra.mxu0 %v193
    %252 = vmatprep.subr.mxu0 0.0
    %253 = vmatpush1.msra.mxu0 0.0
    %254 = vmatprep.subr.mxu0 0.0
    %255 = vmatpush1.msra.mxu0 0.0
    %256 = vmatprep.subr.mxu0 0.0
    %257 = vmatpush1.msra.mxu0 0.0
    %258 = vmatprep.subr.mxu0 0.0
    %259 = vmatpush1.msra.mxu0 0.0
    %260 = vmatprep.subr.mxu0 0.0
    %261 = vmatpush1.msra.mxu0 0.0
    %262 = vmatprep.subr.mxu0 0.0
    %263 = vmatpush1.msra.mxu0 0.0
    %264 = vmatprep.subr.mxu0 0.0
    %265 = vmatpush1.msra.mxu0 0.0
    %266 = vmatprep.subr.mxu0 0.0
    %267 = vmatpush1.msra.mxu0 0.0
    %268 = vmatprep.subr.mxu0 0.0
    %269 = vmatpush1.msra.mxu0 0.0
    %270 = vmatprep.subr.mxu0 0.0
    %271 = vmatpush1.msra.mxu0 0.0
    %272 = vmatprep.subr.mxu0 0.0
    %273 = vmatpush1.msra.mxu0 0.0
    %274 = vmatprep.subr.mxu0 0.0
    %275 = vmatpush1.msra.mxu0 0.0
    %276 = vmatprep.subr.mxu0 0.0
    %277 = vmatpush1.msra.mxu0 0.0
    %278 = vmatprep.subr.mxu0 0.0
    %279 = vmatpush1.msra.mxu0 0.0
    %280 = vmatprep.subr.mxu0 0.0
    %281 = vmatpush1.msra.mxu0 0.0
    %282 = vmatprep.subr.mxu0 0.0
    %283 = vmatpush1.msra.mxu0 0.0
    %284 = vmatprep.subr.mxu0 0.0
    %285 = vmatpush1.msra.mxu0 0.0
    %286 = vmatprep.subr.mxu0 0.0
    %287 = vmatpush1.msra.mxu0 0.0
    %288 = vmatprep.subr.mxu0 0.0
    %289 = vmatpush1.msra.mxu0 0.0
    %290 = vmatprep.subr.mxu0 0.0
    %291 = vmatpush1.msra.mxu0 0.0
    %292 = vmatprep.subr.mxu0 0.0
    %293 = vmatpush1.msra.mxu0 0.0
    %294 = vmatprep.subr.mxu0 0.0
    %295 = vmatpush1.msra.mxu0 0.0
    %296 = vmatprep.subr.mxu0 0.0
    %297 = vmatpush1.msra.mxu0 0.0
    %298 = vmatprep.subr.mxu0 0.0
    %299 = vmatpush1.msra.mxu0 0.0
    %300 = vmatprep.subr.mxu0 0.0
    %301 = vmatpush1.msra.mxu0 0.0
    %302 = vmatprep.subr.mxu0 0.0
    %303 = vmatpush1.msra.mxu0 0.0
    %304 = vmatprep.subr.mxu0 0.0
    %305 = vmatpush1.msra.mxu0 0.0
    %306 = vmatprep.subr.mxu0 0.0
    %307 = vmatpush1.msra.mxu0 0.0
    %308 = vmatprep.mubr.f32.mxu0 0.0
    %309 = vmatmul.mubr.f32.gmra.mrb[0].mxu0 %v233
    %v310 = vpop.f32.mrb[0].mxu0
    %v311 = vadd.f32 %v214, %v310
    %v312 = vpop.f32.mrb[0].mxu0
    %313 = vmatprep.mubr.f32.mxu0 0.0
    %314 = vmatmul.mubr.f32.gmra.mrb[0].mxu0 %v236
    %v315 = vpop.f32.mrb[0].mxu0
    %v316 = vadd.f32 %v219, %v315
    %v317 = vpop.f32.mrb[0].mxu0
    %318 = vmatprep.mubr.f32.mxu0 0.0
    %319 = vmatmul.mubr.f32.gmra.mrb[0].mxu0 %v239
    %v320 = vpop.f32.mrb[0].mxu0
    %v321 = vadd.f32 %v224, %v320
    %v322 = vpop.f32.mrb[0].mxu0
    %323 = vmatprep.mubr.f32.mxu0 0.0
    %324 = vmatmul.mubr.f32.gmra.mrb[0].mxu0 %v242
    %v325 = vpop.f32.mrb[0].mxu0
    %v326 = vadd.f32 %v229, %v325
    %v327 = vpop.f32.mrb[0].mxu0
    %328 = vdwg.mxu0
    %v329 = vand.u32 2147483647, %v311
    %vm330 = vcmp.le.f32.partialorder %v329, 0.7853982
    %vm331 = vcmp.lt.s32.totalorder %v311, 0
    %v332 = vand.u32 %v311, 2139095040
    %v333 = vshrl.u32 %v332, 23
    %v334 = vsub.s32 %v333, 127
    %v335 = vand.u32 2147483647, %v311
    %v336 = vand.u32 %v335, 8388607
    %v337 = vor.u32 %v336, 8388608
    %v338 = vsub.s32 0, %v337
    %v339 = vadd.s32 %v334, 1
    %vm340 = vcmp.gt.s32.totalorder %v339, 0
    %v341 = vsel %vm340, %v339, 0
    %v342 = vshrl.u32 %v341, 5
    %v343 = vand.u32 %v341, 31
    %v344 = vsub.s32 32, %v343
    %v345 = vshrl.u32 683565275, %v344
    %v346 = vshll.u32 683565275, %v343
    %v347 = vshrl.u32 2475754826, %v344
    %v348 = vor.u32 %v346, %v347
    %v349 = vshll.u32 2475754826, %v343
    %v350 = vshrl.u32 2131351028, %v344
    %v351 = vor.u32 %v349, %v350
    %v352 = vshll.u32 2131351028, %v343
    %v353 = vshrl.u32 2102212464, %v344
    %v354 = vor.u32 %v352, %v353
    %v355 = vshll.u32 2102212464, %v343
    %v356 = vshrl.u32 920167782, %v344
    %v357 = vor.u32 %v355, %v356
    %v358 = vshll.u32 920167782, %v343
    %v359 = vshrl.u32 1326507024, %v344
    %v360 = vor.u32 %v358, %v359
    %vm361 = vcmp.lt.s32.totalorder %v342, 1
    %vm362 = vcmp.lt.s32.totalorder %v342, 2
    %vm363 = vcmp.lt.s32.totalorder %v342, 3
    %vm364 = vcmp.lt.s32.totalorder %v342, 4
    %v365 = vsel %vm361, %v345, %v348
    %v366 = vsel %vm364, %v354, 2102212464
    %v367 = vsel %vm363, %v351, %v366
    %v368 = vsel %vm362, %v365, %v367
    %v369 = vsel %vm361, %v348, %v351
    %v370 = vsel %vm364, %v357, 920167782
    %v371 = vsel %vm363, %v354, %v370
    %v372 = vsel %vm362, %v369, %v371
    %v373 = vsel %vm361, %v351, %v354
    %v374 = vsel %vm364, %v360, 1326507024
    %v375 = vsel %vm363, %v357, %v374
    %v376 = vsel %vm362, %v373, %v375
    %v377 = vshll.u32 %v337, 8
    %v378 = vmul.u32.u64.compose %v377, %v376
    %v379 = vextract.low.u32 %v378
    %v380 = vextract.high.u32 %v378
    %v381 = vmul.u32.u64.compose %v377, %v372
    %v382 = vextract.low.u32 %v381
    %v383 = vextract.high.u32 %v381
    %v384 = vmul.u32 %v377, %v368
    %v385 = vadd.s32 %v380, %v382
    %vm386 = vc.u32 %v380, %v382
    %v387 = vadd.s32 %v383, 1
    %v388 = vsel %vm386, %v387, %v383
    %v389 = vadd.s32 %v384, %v388
    %v390 = vadd.s32 %v389, 536870912
    %v391 = vshrl.u32 %v390, 30
    %v392 = vshll.u32 %v391, 30
    %v393 = vsub.s32 %v389, %v392
    %vm394 = vcmp.lt.s32.totalorder %v393, 0
    %v395 = vsub.s32 0, %v393
    %v396 = vsel %vm394, %v395, %v393
    %v397 = vclz %v396
    %v398 = vsub.s32 %v397, 2
    %vm399 = vcmp.gt.s32.totalorder 0, %v398
    %v400 = vsel %vm399, 0, %v398
    %v401 = vsub.s32 32, %v400
    %v402 = vshll.u32 %v393, %v400
    %v403 = vshrl.u32 %v385, %v401
    %v404 = vor.u32 %v402, %v403
    %v405 = vsub.s32 4294967266, %v400
    %v406 = vadd.s32 %v405, 127
    %v407 = vshll.u32 %v406, 23
    %v408 = vor.u32 4788187, %v407
    %v409 = vand.u32 2147483647, %v408
    %v411 = vcvt.s32.f32 %v404
    %v412 = vmul.f32 %v411, %v409
    %v413 = vxor.u32 %v412, 2147483648
    %v414 = vsel %vm331, %v413, %v412
    %v415 = vsub.s32 4, %v391
    %v416 = vsel %vm331, %v415, %v391
    %v417 = vsel %vm330, %v311, %v414
    %v418 = vsel %vm330, 0, %v416
    %v419 = vcosq.f32.pop %v417
    %v420 = vsinq.f32.pop %v417
    %vm421 = vweird.f32 %v311
    %v422 = vadd.s32 %v418, 3
    %v423 = vand.u32 %v422, 3
    %vm424 = vcmp.lt.s32.totalorder %v423, 2
    %vm425 = vcmp.eq.s32.totalorder %v423, 0
    %v426 = vxor.u32 %v420, 2147483648
    %v427 = vsel %vm425, %v419, %v426
    %vm428 = vcmp.eq.s32.totalorder %v423, 2
    %v429 = vxor.u32 %v419, 2147483648
    %v430 = vsel %vm428, %v429, %v420
    %v431 = vsel %vm424, %v427, %v430
    %v432 = vsel %vm421, nan, %v431
    %v433 = vand.u32 2147483647, %v316
    %vm434 = vcmp.le.f32.partialorder %v433, 0.7853982
    %vm435 = vcmp.lt.s32.totalorder %v316, 0
    %v436 = vand.u32 %v316, 2139095040
    %v437 = vshrl.u32 %v436, 23
    %v438 = vsub.s32 %v437, 127
    %v439 = vand.u32 2147483647, %v316
    %v440 = vand.u32 %v439, 8388607
    %v441 = vor.u32 %v440, 8388608
    %v442 = vsub.s32 0, %v441
    %v443 = vadd.s32 %v438, 1
    %vm444 = vcmp.gt.s32.totalorder %v443, 0
    %v445 = vsel %vm444, %v443, 0
    %v446 = vshrl.u32 %v445, 5
    %v447 = vand.u32 %v445, 31
    %v448 = vsub.s32 32, %v447
    %v449 = vshrl.u32 683565275, %v448
    %v450 = vshll.u32 683565275, %v447
    %v451 = vshrl.u32 2475754826, %v448
    %v452 = vor.u32 %v450, %v451
    %v453 = vshll.u32 2475754826, %v447
    %v454 = vshrl.u32 2131351028, %v448
    %v455 = vor.u32 %v453, %v454
    %v456 = vshll.u32 2131351028, %v447
    %v457 = vshrl.u32 2102212464, %v448
    %v458 = vor.u32 %v456, %v457
    %v459 = vshll.u32 2102212464, %v447
    %v460 = vshrl.u32 920167782, %v448
    %v461 = vor.u32 %v459, %v460
    %v462 = vshll.u32 920167782, %v447
    %v463 = vshrl.u32 1326507024, %v448
    %v464 = vor.u32 %v462, %v463
    %vm465 = vcmp.lt.s32.totalorder %v446, 1
    %vm466 = vcmp.lt.s32.totalorder %v446, 2
    %vm467 = vcmp.lt.s32.totalorder %v446, 3
    %vm468 = vcmp.lt.s32.totalorder %v446, 4
    %v469 = vsel %vm465, %v449, %v452
    %v470 = vsel %vm468, %v458, 2102212464
    %v471 = vsel %vm467, %v455, %v470
    %v472 = vsel %vm466, %v469, %v471
    %v473 = vsel %vm465, %v452, %v455
    %v474 = vsel %vm468, %v461, 920167782
    %v475 = vsel %vm467, %v458, %v474
    %v476 = vsel %vm466, %v473, %v475
    %v477 = vsel %vm465, %v455, %v458
    %v478 = vsel %vm468, %v464, 1326507024
    %v479 = vsel %vm467, %v461, %v478
    %v480 = vsel %vm466, %v477, %v479
    %v481 = vshll.u32 %v441, 8
    %v482 = vmul.u32.u64.compose %v481, %v480
    %v483 = vextract.low.u32 %v482
    %v484 = vextract.high.u32 %v482
    %v485 = vmul.u32.u64.compose %v481, %v476
    %v486 = vextract.low.u32 %v485
    %v487 = vextract.high.u32 %v485
    %v488 = vmul.u32 %v481, %v472
    %v489 = vadd.s32 %v484, %v486
    %vm490 = vc.u32 %v484, %v486
    %v491 = vadd.s32 %v487, 1
    %v492 = vsel %vm490, %v491, %v487
    %v493 = vadd.s32 %v488, %v492
    %v494 = vadd.s32 %v493, 536870912
    %v495 = vshrl.u32 %v494, 30
    %v496 = vshll.u32 %v495, 30
    %v497 = vsub.s32 %v493, %v496
    %vm498 = vcmp.lt.s32.totalorder %v497, 0
    %v499 = vsub.s32 0, %v497
    %v500 = vsel %vm498, %v499, %v497
    %v501 = vclz %v500
    %v502 = vsub.s32 %v501, 2
    %vm503 = vcmp.gt.s32.totalorder 0, %v502
    %v504 = vsel %vm503, 0, %v502
    %v505 = vsub.s32 32, %v504
    %v506 = vshll.u32 %v497, %v504
    %v507 = vshrl.u32 %v489, %v505
    %v508 = vor.u32 %v506, %v507
    %v509 = vsub.s32 4294967266, %v504
    %v510 = vadd.s32 %v509, 127
    %v511 = vshll.u32 %v510, 23
    %v512 = vor.u32 4788187, %v511
    %v513 = vand.u32 2147483647, %v512
    %v515 = vcvt.s32.f32 %v508
    %v516 = vmul.f32 %v515, %v513
    %v517 = vxor.u32 %v516, 2147483648
    %v518 = vsel %vm435, %v517, %v516
    %v519 = vsub.s32 4, %v495
    %v520 = vsel %vm435, %v519, %v495
    %v521 = vsel %vm434, %v316, %v518
    %v522 = vsel %vm434, 0, %v520
    %v523 = vcosq.f32.pop %v521
    %v524 = vsinq.f32.pop %v521
    %vm525 = vweird.f32 %v316
    %v526 = vadd.s32 %v522, 3
    %v527 = vand.u32 %v526, 3
    %vm528 = vcmp.lt.s32.totalorder %v527, 2
    %vm529 = vcmp.eq.s32.totalorder %v527, 0
    %v530 = vxor.u32 %v524, 2147483648
    %v531 = vsel %vm529, %v523, %v530
    %vm532 = vcmp.eq.s32.totalorder %v527, 2
    %v533 = vxor.u32 %v523, 2147483648
    %v534 = vsel %vm532, %v533, %v524
    %v535 = vsel %vm528, %v531, %v534
    %v536 = vsel %vm525, nan, %v535
    %v537 = vand.u32 2147483647, %v321
    %vm538 = vcmp.le.f32.partialorder %v537, 0.7853982
    %vm539 = vcmp.lt.s32.totalorder %v321, 0
    %v540 = vand.u32 %v321, 2139095040
    %v541 = vshrl.u32 %v540, 23
    %v542 = vsub.s32 %v541, 127
    %v543 = vand.u32 2147483647, %v321
    %v544 = vand.u32 %v543, 8388607
    %v545 = vor.u32 %v544, 8388608
    %v546 = vsub.s32 0, %v545
    %v547 = vadd.s32 %v542, 1
    %vm548 = vcmp.gt.s32.totalorder %v547, 0
    %v549 = vsel %vm548, %v547, 0
    %v550 = vshrl.u32 %v549, 5
    %v551 = vand.u32 %v549, 31
    %v552 = vsub.s32 32, %v551
    %v553 = vshrl.u32 683565275, %v552
    %v554 = vshll.u32 683565275, %v551
    %v555 = vshrl.u32 2475754826, %v552
    %v556 = vor.u32 %v554, %v555
    %v557 = vshll.u32 2475754826, %v551
    %v558 = vshrl.u32 2131351028, %v552
    %v559 = vor.u32 %v557, %v558
    %v560 = vshll.u32 2131351028, %v551
    %v561 = vshrl.u32 2102212464, %v552
    %v562 = vor.u32 %v560, %v561
    %v563 = vshll.u32 2102212464, %v551
    %v564 = vshrl.u32 920167782, %v552
    %v565 = vor.u32 %v563, %v564
    %v566 = vshll.u32 920167782, %v551
    %v567 = vshrl.u32 1326507024, %v552
    %v568 = vor.u32 %v566, %v567
    %vm569 = vcmp.lt.s32.totalorder %v550, 1
    %vm570 = vcmp.lt.s32.totalorder %v550, 2
    %vm571 = vcmp.lt.s32.totalorder %v550, 3
    %vm572 = vcmp.lt.s32.totalorder %v550, 4
    %v573 = vsel %vm569, %v553, %v556
    %v574 = vsel %vm572, %v562, 2102212464
    %v575 = vsel %vm571, %v559, %v574
    %v576 = vsel %vm570, %v573, %v575
    %v577 = vsel %vm569, %v556, %v559
    %v578 = vsel %vm572, %v565, 920167782
    %v579 = vsel %vm571, %v562, %v578
    %v580 = vsel %vm570, %v577, %v579
    %v581 = vsel %vm569, %v559, %v562
    %v582 = vsel %vm572, %v568, 1326507024
    %v583 = vsel %vm571, %v565, %v582
    %v584 = vsel %vm570, %v581, %v583
    %v585 = vshll.u32 %v545, 8
    %v586 = vmul.u32.u64.compose %v585, %v584
    %v587 = vextract.low.u32 %v586
    %v588 = vextract.high.u32 %v586
    %v589 = vmul.u32.u64.compose %v585, %v580
    %v590 = vextract.low.u32 %v589
    %v591 = vextract.high.u32 %v589
    %v592 = vmul.u32 %v585, %v576
    %v593 = vadd.s32 %v588, %v590
    %vm594 = vc.u32 %v588, %v590
    %v595 = vadd.s32 %v591, 1
    %v596 = vsel %vm594, %v595, %v591
    %v597 = vadd.s32 %v592, %v596
    %v598 = vadd.s32 %v597, 536870912
    %v599 = vshrl.u32 %v598, 30
    %v600 = vshll.u32 %v599, 30
    %v601 = vsub.s32 %v597, %v600
    %vm602 = vcmp.lt.s32.totalorder %v601, 0
    %v603 = vsub.s32 0, %v601
    %v604 = vsel %vm602, %v603, %v601
    %v605 = vclz %v604
    %v606 = vsub.s32 %v605, 2
    %vm607 = vcmp.gt.s32.totalorder 0, %v606
    %v608 = vsel %vm607, 0, %v606
    %v609 = vsub.s32 32, %v608
    %v610 = vshll.u32 %v601, %v608
    %v611 = vshrl.u32 %v593, %v609
    %v612 = vor.u32 %v610, %v611
    %v613 = vsub.s32 4294967266, %v608
    %v614 = vadd.s32 %v613, 127
    %v615 = vshll.u32 %v614, 23
    %v616 = vor.u32 4788187, %v615
    %v617 = vand.u32 2147483647, %v616
    %v619 = vcvt.s32.f32 %v612
    %v620 = vmul.f32 %v619, %v617
    %v621 = vxor.u32 %v620, 2147483648
    %v622 = vsel %vm539, %v621, %v620
    %v623 = vsub.s32 4, %v599
    %v624 = vsel %vm539, %v623, %v599
    %v625 = vsel %vm538, %v321, %v622
    %v626 = vsel %vm538, 0, %v624
    %v627 = vcosq.f32.pop %v625
    %v628 = vsinq.f32.pop %v625
    %vm629 = vweird.f32 %v321
    %v630 = vadd.s32 %v626, 3
    %v631 = vand.u32 %v630, 3
    %vm632 = vcmp.lt.s32.totalorder %v631, 2
    %vm633 = vcmp.eq.s32.totalorder %v631, 0
    %v634 = vxor.u32 %v628, 2147483648
    %v635 = vsel %vm633, %v627, %v634
    %vm636 = vcmp.eq.s32.totalorder %v631, 2
    %v637 = vxor.u32 %v627, 2147483648
    %v638 = vsel %vm636, %v637, %v628
    %v639 = vsel %vm632, %v635, %v638
    %v640 = vsel %vm629, nan, %v639
    %v641 = vand.u32 2147483647, %v326
    %vm642 = vcmp.le.f32.partialorder %v641, 0.7853982
    %vm643 = vcmp.lt.s32.totalorder %v326, 0
    %v644 = vand.u32 %v326, 2139095040
    %v645 = vshrl.u32 %v644, 23
    %v646 = vsub.s32 %v645, 127
    %v647 = vand.u32 2147483647, %v326
    %v648 = vand.u32 %v647, 8388607
    %v649 = vor.u32 %v648, 8388608
    %v650 = vsub.s32 0, %v649
    %v651 = vadd.s32 %v646, 1
    %vm652 = vcmp.gt.s32.totalorder %v651, 0
    %v653 = vsel %vm652, %v651, 0
    %v654 = vshrl.u32 %v653, 5
    %v655 = vand.u32 %v653, 31
    %v656 = vsub.s32 32, %v655
    %v657 = vshrl.u32 683565275, %v656
    %v658 = vshll.u32 683565275, %v655
    %v659 = vshrl.u32 2475754826, %v656
    %v660 = vor.u32 %v658, %v659
    %v661 = vshll.u32 2475754826, %v655
    %v662 = vshrl.u32 2131351028, %v656
    %v663 = vor.u32 %v661, %v662
    %v664 = vshll.u32 2131351028, %v655
    %v665 = vshrl.u32 2102212464, %v656
    %v666 = vor.u32 %v664, %v665
    %v667 = vshll.u32 2102212464, %v655
    %v668 = vshrl.u32 920167782, %v656
    %v669 = vor.u32 %v667, %v668
    %v670 = vshll.u32 920167782, %v655
    %v671 = vshrl.u32 1326507024, %v656
    %v672 = vor.u32 %v670, %v671
    %vm673 = vcmp.lt.s32.totalorder %v654, 1
    %vm674 = vcmp.lt.s32.totalorder %v654, 2
    %vm675 = vcmp.lt.s32.totalorder %v654, 3
    %vm676 = vcmp.lt.s32.totalorder %v654, 4
    %v677 = vsel %vm673, %v657, %v660
    %v678 = vsel %vm676, %v666, 2102212464
    %v679 = vsel %vm675, %v663, %v678
    %v680 = vsel %vm674, %v677, %v679
    %v681 = vsel %vm673, %v660, %v663
    %v682 = vsel %vm676, %v669, 920167782
    %v683 = vsel %vm675, %v666, %v682
    %v684 = vsel %vm674, %v681, %v683
    %v685 = vsel %vm673, %v663, %v666
    %v686 = vsel %vm676, %v672, 1326507024
    %v687 = vsel %vm675, %v669, %v686
    %v688 = vsel %vm674, %v685, %v687
    %v689 = vshll.u32 %v649, 8
    %v690 = vmul.u32.u64.compose %v689, %v688
    %v691 = vextract.low.u32 %v690
    %v692 = vextract.high.u32 %v690
    %v693 = vmul.u32.u64.compose %v689, %v684
    %v694 = vextract.low.u32 %v693
    %v695 = vextract.high.u32 %v693
    %v696 = vmul.u32 %v689, %v680
    %v697 = vadd.s32 %v692, %v694
    %vm698 = vc.u32 %v692, %v694
    %v699 = vadd.s32 %v695, 1
    %v700 = vsel %vm698, %v699, %v695
    %v701 = vadd.s32 %v696, %v700
    %v702 = vadd.s32 %v701, 536870912
    %v703 = vshrl.u32 %v702, 30
    %v704 = vshll.u32 %v703, 30
    %v705 = vsub.s32 %v701, %v704
    %vm706 = vcmp.lt.s32.totalorder %v705, 0
    %v707 = vsub.s32 0, %v705
    %v708 = vsel %vm706, %v707, %v705
    %v709 = vclz %v708
    %v710 = vsub.s32 %v709, 2
    %vm711 = vcmp.gt.s32.totalorder 0, %v710
    %v712 = vsel %vm711, 0, %v710
    %v713 = vsub.s32 32, %v712
    %v714 = vshll.u32 %v705, %v712
    %v715 = vshrl.u32 %v697, %v713
    %v716 = vor.u32 %v714, %v715
    %v717 = vsub.s32 4294967266, %v712
    %v718 = vadd.s32 %v717, 127
    %v719 = vshll.u32 %v718, 23
    %v720 = vor.u32 4788187, %v719
    %v721 = vand.u32 2147483647, %v720
    %v723 = vcvt.s32.f32 %v716
    %v724 = vmul.f32 %v723, %v721
    %v725 = vxor.u32 %v724, 2147483648
    %v726 = vsel %vm643, %v725, %v724
    %v727 = vsub.s32 4, %v703
    %v728 = vsel %vm643, %v727, %v703
    %v729 = vsel %vm642, %v326, %v726
    %v730 = vsel %vm642, 0, %v728
    %v731 = vcosq.f32.pop %v729
    %v732 = vsinq.f32.pop %v729
    %vm733 = vweird.f32 %v326
    %v734 = vadd.s32 %v730, 3
    %v735 = vand.u32 %v734, 3
    %vm736 = vcmp.lt.s32.totalorder %v735, 2
    %vm737 = vcmp.eq.s32.totalorder %v735, 0
    %v738 = vxor.u32 %v732, 2147483648
    %v739 = vsel %vm737, %v731, %v738
    %vm740 = vcmp.eq.s32.totalorder %v735, 2
    %v741 = vxor.u32 %v731, 2147483648
    %v742 = vsel %vm740, %v741, %v732
    %v743 = vsel %vm736, %v739, %v742
    %v744 = vsel %vm733, nan, %v743
    %v745 = vmul.f32 %v311, 0.5
    %v746 = vmul.f32 %v316, 0.5
    %v747 = vmul.f32 %v321, 0.5
    %v748 = vmul.f32 %v326, 0.5
    %v749 = vmul.f32 %v311, 0.044715
    %v750 = vmul.f32 %v316, 0.044715
    %v751 = vmul.f32 %v321, 0.044715
    %v752 = vmul.f32 %v326, 0.044715
    %v753 = vmul.f32 %v749, %v311
    %v754 = vmul.f32 %v750, %v316
    %v755 = vmul.f32 %v751, %v321
    %v756 = vmul.f32 %v752, %v326
    %v757 = vmul.f32 %v753, %v311
    %v758 = vmul.f32 %v754, %v316
    %v759 = vmul.f32 %v755, %v321
    %v760 = vmul.f32 %v756, %v326
    %v761 = vadd.f32 %v311, %v757
    %v762 = vadd.f32 %v316, %v758
    %v763 = vadd.f32 %v321, %v759
    %v764 = vadd.f32 %v326, %v760
    %v765 = vmul.f32 %v761, 0.7978846
    %v766 = vmul.f32 %v762, 0.7978846
    %v767 = vmul.f32 %v763, 0.7978846
    %v768 = vmul.f32 %v764, 0.7978846
    %v769 = vtanh.pop %v765
    %v770 = vtanh.pop %v766
    %v771 = vtanh.pop %v767
    %v772 = vtanh.pop %v768
    %v773 = vadd.f32 %v769, 1.0
    %v774 = vadd.f32 %v770, 1.0
    %v775 = vadd.f32 %v771, 1.0
    %v776 = vadd.f32 %v772, 1.0
    %v777 = vmul.f32 %v745, %v773
    %v778 = vmul.f32 %v746, %v774
    %v779 = vmul.f32 %v747, %v775
    %v780 = vmul.f32 %v748, %v776
    %v781 = vsel %vm199, %v432, %v777
    %v782 = vsel %vm200, %v536, %v778
    %v783 = vsel %vm201, %v640, %v779
    %v784 = vsel %vm202, %v744, %v780
    %s785 = scalar_lea.vmem %s3, 32
    %v786 = vld [vmem:[%s785] sm:$0xff]
    %v787 = vld [vmem:[%s785 + $0x8] sm:$0xff]
    %v788 = vld [vmem:[%s785 + $0x10] sm:$0xff]
    %v789 = vld [vmem:[%s785 + $0x18] sm:$0xff]
    %s790 = scalar_lea.vmem %s4, 32
    %v791 = vld [vmem:[%s790] sm:$0xff]
    %v792 = vld [vmem:[%s790 + $0x8] sm:$0xff]
    %v793 = vld [vmem:[%s790 + $0x10] sm:$0xff]
    %v794 = vld [vmem:[%s790 + $0x18] sm:$0xff]
    %796 = vset.pattern.permute.xlu0 0
    %797 = vperm.xlu0 %796, %v791
    %v798 = vpop.permute.xlu0 %797
    %801 = vset.pattern.permute.xlu0 0
    %802 = vperm.xlu0 %801, %v792
    %v803 = vpop.permute.xlu0 %802
    %806 = vset.pattern.permute.xlu0 0
    %807 = vperm.xlu0 %806, %v793
    %v808 = vpop.permute.xlu0 %807
    %811 = vset.pattern.permute.xlu0 0
    %812 = vperm.xlu0 %811, %v794
    %v813 = vpop.permute.xlu0 %812
    %v816 = vsel %vm231, %v786, 0
    %v819 = vsel %vm231, %v787, 0
    %v822 = vsel %vm231, %v788, 0
    %v825 = vsel %vm231, %v789, 0
    %827 = vmatprep.subr.mxu0 0.0
    %828 = vmatpush1.msra.mxu0 %v781
    %829 = vmatprep.subr.mxu0 0.0
    %830 = vmatpush1.msra.mxu0 %v782
    %831 = vmatprep.subr.mxu0 0.0
    %832 = vmatpush1.msra.mxu0 %v783
    %833 = vmatprep.subr.mxu0 0.0
    %834 = vmatpush1.msra.mxu0 %v784
    %835 = vmatprep.subr.mxu0 0.0
    %836 = vmatpush1.msra.mxu0 0.0
    %837 = vmatprep.subr.mxu0 0.0
    %838 = vmatpush1.msra.mxu0 0.0
    %839 = vmatprep.subr.mxu0 0.0
    %840 = vmatpush1.msra.mxu0 0.0
    %841 = vmatprep.subr.mxu0 0.0
    %842 = vmatpush1.msra.mxu0 0.0
    %843 = vmatprep.subr.mxu0 0.0
    %844 = vmatpush1.msra.mxu0 0.0
    %845 = vmatprep.subr.mxu0 0.0
    %846 = vmatpush1.msra.mxu0 0.0
    %847 = vmatprep.subr.mxu0 0.0
    %848 = vmatpush1.msra.mxu0 0.0
    %849 = vmatprep.subr.mxu0 0.0
    %850 = vmatpush1.msra.mxu0 0.0
    %851 = vmatprep.subr.mxu0 0.0
    %852 = vmatpush1.msra.mxu0 0.0
    %853 = vmatprep.subr.mxu0 0.0
    %854 = vmatpush1.msra.mxu0 0.0
    %855 = vmatprep.subr.mxu0 0.0
    %856 = vmatpush1.msra.mxu0 0.0
    %857 = vmatprep.subr.mxu0 0.0
    %858 = vmatpush1.msra.mxu0 0.0
    %859 = vmatprep.subr.mxu0 0.0
    %860 = vmatpush1.msra.mxu0 0.0
    %861 = vmatprep.subr.mxu0 0.0
    %862 = vmatpush1.msra.mxu0 0.0
    %863 = vmatprep.subr.mxu0 0.0
    %864 = vmatpush1.msra.mxu0 0.0
    %865 = vmatprep.subr.mxu0 0.0
    %866 = vmatpush1.msra.mxu0 0.0
    %867 = vmatprep.subr.mxu0 0.0
    %868 = vmatpush1.msra.mxu0 0.0
    %869 = vmatprep.subr.mxu0 0.0
    %870 = vmatpush1.msra.mxu0 0.0
    %871 = vmatprep.subr.mxu0 0.0
    %872 = vmatpush1.msra.mxu0 0.0
    %873 = vmatprep.subr.mxu0 0.0
    %874 = vmatpush1.msra.mxu0 0.0
    %875 = vmatprep.subr.mxu0 0.0
    %876 = vmatpush1.msra.mxu0 0.0
    %877 = vmatprep.subr.mxu0 0.0
    %878 = vmatpush1.msra.mxu0 0.0
    %879 = vmatprep.subr.mxu0 0.0
    %880 = vmatpush1.msra.mxu0 0.0
    %881 = vmatprep.subr.mxu0 0.0
    %882 = vmatpush1.msra.mxu0 0.0
    %883 = vmatprep.subr.mxu0 0.0
    %884 = vmatpush1.msra.mxu0 0.0
    %885 = vmatprep.subr.mxu0 0.0
    %886 = vmatpush1.msra.mxu0 0.0
    %887 = vmatprep.subr.mxu0 0.0
    %888 = vmatpush1.msra.mxu0 0.0
    %889 = vmatprep.subr.mxu0 0.0
    %890 = vmatpush1.msra.mxu0 0.0
    %891 = vmatprep.mubr.f32.mxu0 0.0
    %892 = vmatmul.mubr.f32.gmra.mrb[0].mxu0 %v816
    %v893 = vpop.f32.mrb[0].mxu0
    %v894 = vadd.f32 %v798, %v893
    %v895 = vpop.f32.mrb[0].mxu0
    %896 = vmatprep.mubr.f32.mxu0 0.0
    %897 = vmatmul.mubr.f32.gmra.mrb[0].mxu0 %v819
    %v898 = vpop.f32.mrb[0].mxu0
    %v899 = vadd.f32 %v803, %v898
    %v900 = vpop.f32.mrb[0].mxu0
    %901 = vmatprep.mubr.f32.mxu0 0.0
    %902 = vmatmul.mubr.f32.gmra.mrb[0].mxu0 %v822
    %v903 = vpop.f32.mrb[0].mxu0
    %v904 = vadd.f32 %v808, %v903
    %v905 = vpop.f32.mrb[0].mxu0
    %906 = vmatprep.mubr.f32.mxu0 0.0
    %907 = vmatmul.mubr.f32.gmra.mrb[0].mxu0 %v825
    %v908 = vpop.f32.mrb[0].mxu0
    %v909 = vadd.f32 %v813, %v908
    %v910 = vpop.f32.mrb[0].mxu0
    %911 = vdwg.mxu0
    %v912 = vand.u32 2147483647, %v894
    %vm913 = vcmp.le.f32.partialorder %v912, 0.7853982
    %vm914 = vcmp.lt.s32.totalorder %v894, 0
    %v915 = vand.u32 %v894, 2139095040
    %v916 = vshrl.u32 %v915, 23
    %v917 = vsub.s32 %v916, 127
    %v918 = vand.u32 2147483647, %v894
    %v919 = vand.u32 %v918, 8388607
    %v920 = vor.u32 %v919, 8388608
    %v921 = vsub.s32 0, %v920
    %v922 = vadd.s32 %v917, 1
    %vm923 = vcmp.gt.s32.totalorder %v922, 0
    %v924 = vsel %vm923, %v922, 0
    %v925 = vshrl.u32 %v924, 5
    %v926 = vand.u32 %v924, 31
    %v927 = vsub.s32 32, %v926
    %v928 = vshrl.u32 683565275, %v927
    %v929 = vshll.u32 683565275, %v926
    %v930 = vshrl.u32 2475754826, %v927
    %v931 = vor.u32 %v929, %v930
    %v932 = vshll.u32 2475754826, %v926
    %v933 = vshrl.u32 2131351028, %v927
    %v934 = vor.u32 %v932, %v933
    %v935 = vshll.u32 2131351028, %v926
    %v936 = vshrl.u32 2102212464, %v927
    %v937 = vor.u32 %v935, %v936
    %v938 = vshll.u32 2102212464, %v926
    %v939 = vshrl.u32 920167782, %v927
    %v940 = vor.u32 %v938, %v939
    %v941 = vshll.u32 920167782, %v926
    %v942 = vshrl.u32 1326507024, %v927
    %v943 = vor.u32 %v941, %v942
    %vm944 = vcmp.lt.s32.totalorder %v925, 1
    %vm945 = vcmp.lt.s32.totalorder %v925, 2
    %vm946 = vcmp.lt.s32.totalorder %v925, 3
    %vm947 = vcmp.lt.s32.totalorder %v925, 4
    %v948 = vsel %vm944, %v928, %v931
    %v949 = vsel %vm947, %v937, 2102212464
    %v950 = vsel %vm946, %v934, %v949
    %v951 = vsel %vm945, %v948, %v950
    %v952 = vsel %vm944, %v931, %v934
    %v953 = vsel %vm947, %v940, 920167782
    %v954 = vsel %vm946, %v937, %v953
    %v955 = vsel %vm945, %v952, %v954
    %v956 = vsel %vm944, %v934, %v937
    %v957 = vsel %vm947, %v943, 1326507024
    %v958 = vsel %vm946, %v940, %v957
    %v959 = vsel %vm945, %v956, %v958
    %v960 = vshll.u32 %v920, 8
    %v961 = vmul.u32.u64.compose %v960, %v959
    %v962 = vextract.low.u32 %v961
    %v963 = vextract.high.u32 %v961
    %v964 = vmul.u32.u64.compose %v960, %v955
    %v965 = vextract.low.u32 %v964
    %v966 = vextract.high.u32 %v964
    %v967 = vmul.u32 %v960, %v951
    %v968 = vadd.s32 %v963, %v965
    %vm969 = vc.u32 %v963, %v965
    %v970 = vadd.s32 %v966, 1
    %v971 = vsel %vm969, %v970, %v966
    %v972 = vadd.s32 %v967, %v971
    %v973 = vadd.s32 %v972, 536870912
    %v974 = vshrl.u32 %v973, 30
    %v975 = vshll.u32 %v974, 30
    %v976 = vsub.s32 %v972, %v975
    %vm977 = vcmp.lt.s32.totalorder %v976, 0
    %v978 = vsub.s32 0, %v976
    %v979 = vsel %vm977, %v978, %v976
    %v980 = vclz %v979
    %v981 = vsub.s32 %v980, 2
    %vm982 = vcmp.gt.s32.totalorder 0, %v981
    %v983 = vsel %vm982, 0, %v981
    %v984 = vsub.s32 32, %v983
    %v985 = vshll.u32 %v976, %v983
    %v986 = vshrl.u32 %v968, %v984
    %v987 = vor.u32 %v985, %v986
    %v988 = vsub.s32 4294967266, %v983
    %v989 = vadd.s32 %v988, 127
    %v990 = vshll.u32 %v989, 23
    %v991 = vor.u32 4788187, %v990
    %v992 = vand.u32 2147483647, %v991
    %v994 = vcvt.s32.f32 %v987
    %v995 = vmul.f32 %v994, %v992
    %v996 = vxor.u32 %v995, 2147483648
    %v997 = vsel %vm914, %v996, %v995
    %v998 = vsub.s32 4, %v974
    %v999 = vsel %vm914, %v998, %v974
    %v1000 = vsel %vm913, %v894, %v997
    %v1001 = vsel %vm913, 0, %v999
    %v1002 = vcosq.f32.pop %v1000
    %v1003 = vsinq.f32.pop %v1000
    %vm1004 = vweird.f32 %v894
    %v1005 = vadd.s32 %v1001, 3
    %v1006 = vand.u32 %v1005, 3
    %vm1007 = vcmp.lt.s32.totalorder %v1006, 2
    %vm1008 = vcmp.eq.s32.totalorder %v1006, 0
    %v1009 = vxor.u32 %v1003, 2147483648
    %v1010 = vsel %vm1008, %v1002, %v1009
    %vm1011 = vcmp.eq.s32.totalorder %v1006, 2
    %v1012 = vxor.u32 %v1002, 2147483648
    %v1013 = vsel %vm1011, %v1012, %v1003
    %v1014 = vsel %vm1007, %v1010, %v1013
    %v1015 = vsel %vm1004, nan, %v1014
    %v1016 = vand.u32 2147483647, %v899
    %vm1017 = vcmp.le.f32.partialorder %v1016, 0.7853982
    %vm1018 = vcmp.lt.s32.totalorder %v899, 0
    %v1019 = vand.u32 %v899, 2139095040
    %v1020 = vshrl.u32 %v1019, 23
    %v1021 = vsub.s32 %v1020, 127
    %v1022 = vand.u32 2147483647, %v899
    %v1023 = vand.u32 %v1022, 8388607
    %v1024 = vor.u32 %v1023, 8388608
    %v1025 = vsub.s32 0, %v1024
    %v1026 = vadd.s32 %v1021, 1
    %vm1027 = vcmp.gt.s32.totalorder %v1026, 0
    %v1028 = vsel %vm1027, %v1026, 0
    %v1029 = vshrl.u32 %v1028, 5
    %v1030 = vand.u32 %v1028, 31
    %v1031 = vsub.s32 32, %v1030
    %v1032 = vshrl.u32 683565275, %v1031
    %v1033 = vshll.u32 683565275, %v1030
    %v1034 = vshrl.u32 2475754826, %v1031
    %v1035 = vor.u32 %v1033, %v1034
    %v1036 = vshll.u32 2475754826, %v1030
    %v1037 = vshrl.u32 2131351028, %v1031
    %v1038 = vor.u32 %v1036, %v1037
    %v1039 = vshll.u32 2131351028, %v1030
    %v1040 = vshrl.u32 2102212464, %v1031
    %v1041 = vor.u32 %v1039, %v1040
    %v1042 = vshll.u32 2102212464, %v1030
    %v1043 = vshrl.u32 920167782, %v1031
    %v1044 = vor.u32 %v1042, %v1043
    %v1045 = vshll.u32 920167782, %v1030
    %v1046 = vshrl.u32 1326507024, %v1031
    %v1047 = vor.u32 %v1045, %v1046
    %vm1048 = vcmp.lt.s32.totalorder %v1029, 1
    %vm1049 = vcmp.lt.s32.totalorder %v1029, 2
    %vm1050 = vcmp.lt.s32.totalorder %v1029, 3
    %vm1051 = vcmp.lt.s32.totalorder %v1029, 4
    %v1052 = vsel %vm1048, %v1032, %v1035
    %v1053 = vsel %vm1051, %v1041, 2102212464
    %v1054 = vsel %vm1050, %v1038, %v1053
    %v1055 = vsel %vm1049, %v1052, %v1054
    %v1056 = vsel %vm1048, %v1035, %v1038
    %v1057 = vsel %vm1051, %v1044, 920167782
    %v1058 = vsel %vm1050, %v1041, %v1057
    %v1059 = vsel %vm1049, %v1056, %v1058
    %v1060 = vsel %vm1048, %v1038, %v1041
    %v1061 = vsel %vm1051, %v1047, 1326507024
    %v1062 = vsel %vm1050, %v1044, %v1061
    %v1063 = vsel %vm1049, %v1060, %v1062
    %v1064 = vshll.u32 %v1024, 8
    %v1065 = vmul.u32.u64.compose %v1064, %v1063
    %v1066 = vextract.low.u32 %v1065
    %v1067 = vextract.high.u32 %v1065
    %v1068 = vmul.u32.u64.compose %v1064, %v1059
    %v1069 = vextract.low.u32 %v1068
    %v1070 = vextract.high.u32 %v1068
    %v1071 = vmul.u32 %v1064, %v1055
    %v1072 = vadd.s32 %v1067, %v1069
    %vm1073 = vc.u32 %v1067, %v1069
    %v1074 = vadd.s32 %v1070, 1
    %v1075 = vsel %vm1073, %v1074, %v1070
    %v1076 = vadd.s32 %v1071, %v1075
    %v1077 = vadd.s32 %v1076, 536870912
    %v1078 = vshrl.u32 %v1077, 30
    %v1079 = vshll.u32 %v1078, 30
    %v1080 = vsub.s32 %v1076, %v1079
    %vm1081 = vcmp.lt.s32.totalorder %v1080, 0
    %v1082 = vsub.s32 0, %v1080
    %v1083 = vsel %vm1081, %v1082, %v1080
    %v1084 = vclz %v1083
    %v1085 = vsub.s32 %v1084, 2
    %vm1086 = vcmp.gt.s32.totalorder 0, %v1085
    %v1087 = vsel %vm1086, 0, %v1085
    %v1088 = vsub.s32 32, %v1087
    %v1089 = vshll.u32 %v1080, %v1087
    %v1090 = vshrl.u32 %v1072, %v1088
    %v1091 = vor.u32 %v1089, %v1090
    %v1092 = vsub.s32 4294967266, %v1087
    %v1093 = vadd.s32 %v1092, 127
    %v1094 = vshll.u32 %v1093, 23
    %v1095 = vor.u32 4788187, %v1094
    %v1096 = vand.u32 2147483647, %v1095
    %v1098 = vcvt.s32.f32 %v1091
    %v1099 = vmul.f32 %v1098, %v1096
    %v1100 = vxor.u32 %v1099, 2147483648
    %v1101 = vsel %vm1018, %v1100, %v1099
    %v1102 = vsub.s32 4, %v1078
    %v1103 = vsel %vm1018, %v1102, %v1078
    %v1104 = vsel %vm1017, %v899, %v1101
    %v1105 = vsel %vm1017, 0, %v1103
    %v1106 = vcosq.f32.pop %v1104
    %v1107 = vsinq.f32.pop %v1104
    %vm1108 = vweird.f32 %v899
    %v1109 = vadd.s32 %v1105, 3
    %v1110 = vand.u32 %v1109, 3
    %vm1111 = vcmp.lt.s32.totalorder %v1110, 2
    %vm1112 = vcmp.eq.s32.totalorder %v1110, 0
    %v1113 = vxor.u32 %v1107, 2147483648
    %v1114 = vsel %vm1112, %v1106, %v1113
    %vm1115 = vcmp.eq.s32.totalorder %v1110, 2
    %v1116 = vxor.u32 %v1106, 2147483648
    %v1117 = vsel %vm1115, %v1116, %v1107
    %v1118 = vsel %vm1111, %v1114, %v1117
    %v1119 = vsel %vm1108, nan, %v1118
    %v1120 = vand.u32 2147483647, %v904
    %vm1121 = vcmp.le.f32.partialorder %v1120, 0.7853982
    %vm1122 = vcmp.lt.s32.totalorder %v904, 0
    %v1123 = vand.u32 %v904, 2139095040
    %v1124 = vshrl.u32 %v1123, 23
    %v1125 = vsub.s32 %v1124, 127
    %v1126 = vand.u32 2147483647, %v904
    %v1127 = vand.u32 %v1126, 8388607
    %v1128 = vor.u32 %v1127, 8388608
    %v1129 = vsub.s32 0, %v1128
    %v1130 = vadd.s32 %v1125, 1
    %vm1131 = vcmp.gt.s32.totalorder %v1130, 0
    %v1132 = vsel %vm1131, %v1130, 0
    %v1133 = vshrl.u32 %v1132, 5
    %v1134 = vand.u32 %v1132, 31
    %v1135 = vsub.s32 32, %v1134
    %v1136 = vshrl.u32 683565275, %v1135
    %v1137 = vshll.u32 683565275, %v1134
    %v1138 = vshrl.u32 2475754826, %v1135
    %v1139 = vor.u32 %v1137, %v1138
    %v1140 = vshll.u32 2475754826, %v1134
    %v1141 = vshrl.u32 2131351028, %v1135
    %v1142 = vor.u32 %v1140, %v1141
    %v1143 = vshll.u32 2131351028, %v1134
    %v1144 = vshrl.u32 2102212464, %v1135
    %v1145 = vor.u32 %v1143, %v1144
    %v1146 = vshll.u32 2102212464, %v1134
    %v1147 = vshrl.u32 920167782, %v1135
    %v1148 = vor.u32 %v1146, %v1147
    %v1149 = vshll.u32 920167782, %v1134
    %v1150 = vshrl.u32 1326507024, %v1135
    %v1151 = vor.u32 %v1149, %v1150
    %vm1152 = vcmp.lt.s32.totalorder %v1133, 1
    %vm1153 = vcmp.lt.s32.totalorder %v1133, 2
    %vm1154 = vcmp.lt.s32.totalorder %v1133, 3
    %vm1155 = vcmp.lt.s32.totalorder %v1133, 4
    %v1156 = vsel %vm1152, %v1136, %v1139
    %v1157 = vsel %vm1155, %v1145, 2102212464
    %v1158 = vsel %vm1154, %v1142, %v1157
    %v1159 = vsel %vm1153, %v1156, %v1158
    %v1160 = vsel %vm1152, %v1139, %v1142
    %v1161 = vsel %vm1155, %v1148, 920167782
    %v1162 = vsel %vm1154, %v1145, %v1161
    %v1163 = vsel %vm1153, %v1160, %v1162
    %v1164 = vsel %vm1152, %v1142, %v1145
    %v1165 = vsel %vm1155, %v1151, 1326507024
    %v1166 = vsel %vm1154, %v1148, %v1165
    %v1167 = vsel %vm1153, %v1164, %v1166
    %v1168 = vshll.u32 %v1128, 8
    %v1169 = vmul.u32.u64.compose %v1168, %v1167
    %v1170 = vextract.low.u32 %v1169
    %v1171 = vextract.high.u32 %v1169
    %v1172 = vmul.u32.u64.compose %v1168, %v1163
    %v1173 = vextract.low.u32 %v1172
    %v1174 = vextract.high.u32 %v1172
    %v1175 = vmul.u32 %v1168, %v1159
    %v1176 = vadd.s32 %v1171, %v1173
    %vm1177 = vc.u32 %v1171, %v1173
    %v1178 = vadd.s32 %v1174, 1
    %v1179 = vsel %vm1177, %v1178, %v1174
    %v1180 = vadd.s32 %v1175, %v1179
    %v1181 = vadd.s32 %v1180, 536870912
    %v1182 = vshrl.u32 %v1181, 30
    %v1183 = vshll.u32 %v1182, 30
    %v1184 = vsub.s32 %v1180, %v1183
    %vm1185 = vcmp.lt.s32.totalorder %v1184, 0
    %v1186 = vsub.s32 0, %v1184
    %v1187 = vsel %vm1185, %v1186, %v1184
    %v1188 = vclz %v1187
    %v1189 = vsub.s32 %v1188, 2
    %vm1190 = vcmp.gt.s32.totalorder 0, %v1189
    %v1191 = vsel %vm1190, 0, %v1189
    %v1192 = vsub.s32 32, %v1191
    %v1193 = vshll.u32 %v1184, %v1191
    %v1194 = vshrl.u32 %v1176, %v1192
    %v1195 = vor.u32 %v1193, %v1194
    %v1196 = vsub.s32 4294967266, %v1191
    %v1197 = vadd.s32 %v1196, 127
    %v1198 = vshll.u32 %v1197, 23
    %v1199 = vor.u32 4788187, %v1198
    %v1200 = vand.u32 2147483647, %v1199
    %v1202 = vcvt.s32.f32 %v1195
    %v1203 = vmul.f32 %v1202, %v1200
    %v1204 = vxor.u32 %v1203, 2147483648
    %v1205 = vsel %vm1122, %v1204, %v1203
    %v1206 = vsub.s32 4, %v1182
    %v1207 = vsel %vm1122, %v1206, %v1182
    %v1208 = vsel %vm1121, %v904, %v1205
    %v1209 = vsel %vm1121, 0, %v1207
    %v1210 = vcosq.f32.pop %v1208
    %v1211 = vsinq.f32.pop %v1208
    %vm1212 = vweird.f32 %v904
    %v1213 = vadd.s32 %v1209, 3
    %v1214 = vand.u32 %v1213, 3
    %vm1215 = vcmp.lt.s32.totalorder %v1214, 2
    %vm1216 = vcmp.eq.s32.totalorder %v1214, 0
    %v1217 = vxor.u32 %v1211, 2147483648
    %v1218 = vsel %vm1216, %v1210, %v1217
    %vm1219 = vcmp.eq.s32.totalorder %v1214, 2
    %v1220 = vxor.u32 %v1210, 2147483648
    %v1221 = vsel %vm1219, %v1220, %v1211
    %v1222 = vsel %vm1215, %v1218, %v1221
    %v1223 = vsel %vm1212, nan, %v1222
    %v1224 = vand.u32 2147483647, %v909
    %vm1225 = vcmp.le.f32.partialorder %v1224, 0.7853982
    %vm1226 = vcmp.lt.s32.totalorder %v909, 0
    %v1227 = vand.u32 %v909, 2139095040
    %v1228 = vshrl.u32 %v1227, 23
    %v1229 = vsub.s32 %v1228, 127
    %v1230 = vand.u32 2147483647, %v909
    %v1231 = vand.u32 %v1230, 8388607
    %v1232 = vor.u32 %v1231, 8388608
    %v1233 = vsub.s32 0, %v1232
    %v1234 = vadd.s32 %v1229, 1
    %vm1235 = vcmp.gt.s32.totalorder %v1234, 0
    %v1236 = vsel %vm1235, %v1234, 0
    %v1237 = vshrl.u32 %v1236, 5
    %v1238 = vand.u32 %v1236, 31
    %v1239 = vsub.s32 32, %v1238
    %v1240 = vshrl.u32 683565275, %v1239
    %v1241 = vshll.u32 683565275, %v1238
    %v1242 = vshrl.u32 2475754826, %v1239
    %v1243 = vor.u32 %v1241, %v1242
    %v1244 = vshll.u32 2475754826, %v1238
    %v1245 = vshrl.u32 2131351028, %v1239
    %v1246 = vor.u32 %v1244, %v1245
    %v1247 = vshll.u32 2131351028, %v1238
    %v1248 = vshrl.u32 2102212464, %v1239
    %v1249 = vor.u32 %v1247, %v1248
    %v1250 = vshll.u32 2102212464, %v1238
    %v1251 = vshrl.u32 920167782, %v1239
    %v1252 = vor.u32 %v1250, %v1251
    %v1253 = vshll.u32 920167782, %v1238
    %v1254 = vshrl.u32 1326507024, %v1239
    %v1255 = vor.u32 %v1253, %v1254
    %vm1256 = vcmp.lt.s32.totalorder %v1237, 1
    %vm1257 = vcmp.lt.s32.totalorder %v1237, 2
    %vm1258 = vcmp.lt.s32.totalorder %v1237, 3
    %vm1259 = vcmp.lt.s32.totalorder %v1237, 4
    %v1260 = vsel %vm1256, %v1240, %v1243
    %v1261 = vsel %vm1259, %v1249, 2102212464
    %v1262 = vsel %vm1258, %v1246, %v1261
    %v1263 = vsel %vm1257, %v1260, %v1262
    %v1264 = vsel %vm1256, %v1243, %v1246
    %v1265 = vsel %vm1259, %v1252, 920167782
    %v1266 = vsel %vm1258, %v1249, %v1265
    %v1267 = vsel %vm1257, %v1264, %v1266
    %v1268 = vsel %vm1256, %v1246, %v1249
    %v1269 = vsel %vm1259, %v1255, 1326507024
    %v1270 = vsel %vm1258, %v1252, %v1269
    %v1271 = vsel %vm1257, %v1268, %v1270
    %v1272 = vshll.u32 %v1232, 8
    %v1273 = vmul.u32.u64.compose %v1272, %v1271
    %v1274 = vextract.low.u32 %v1273
    %v1275 = vextract.high.u32 %v1273
    %v1276 = vmul.u32.u64.compose %v1272, %v1267
    %v1277 = vextract.low.u32 %v1276
    %v1278 = vextract.high.u32 %v1276
    %v1279 = vmul.u32 %v1272, %v1263
    %v1280 = vadd.s32 %v1275, %v1277
    %vm1281 = vc.u32 %v1275, %v1277
    %v1282 = vadd.s32 %v1278, 1
    %v1283 = vsel %vm1281, %v1282, %v1278
    %v1284 = vadd.s32 %v1279, %v1283
    %v1285 = vadd.s32 %v1284, 536870912
    %v1286 = vshrl.u32 %v1285, 30
    %v1287 = vshll.u32 %v1286, 30
    %v1288 = vsub.s32 %v1284, %v1287
    %vm1289 = vcmp.lt.s32.totalorder %v1288, 0
    %v1290 = vsub.s32 0, %v1288
    %v1291 = vsel %vm1289, %v1290, %v1288
    %v1292 = vclz %v1291
    %v1293 = vsub.s32 %v1292, 2
    %vm1294 = vcmp.gt.s32.totalorder 0, %v1293
    %v1295 = vsel %vm1294, 0, %v1293
    %v1296 = vsub.s32 32, %v1295
    %v1297 = vshll.u32 %v1288, %v1295
    %v1298 = vshrl.u32 %v1280, %v1296
    %v1299 = vor.u32 %v1297, %v1298
    %v1300 = vsub.s32 4294967266, %v1295
    %v1301 = vadd.s32 %v1300, 127
    %v1302 = vshll.u32 %v1301, 23
    %v1303 = vor.u32 4788187, %v1302
    %v1304 = vand.u32 2147483647, %v1303
    %v1306 = vcvt.s32.f32 %v1299
    %v1307 = vmul.f32 %v1306, %v1304
    %v1308 = vxor.u32 %v1307, 2147483648
    %v1309 = vsel %vm1226, %v1308, %v1307
    %v1310 = vsub.s32 4, %v1286
    %v1311 = vsel %vm1226, %v1310, %v1286
    %v1312 = vsel %vm1225, %v909, %v1309
    %v1313 = vsel %vm1225, 0, %v1311
    %v1314 = vcosq.f32.pop %v1312
    %v1315 = vsinq.f32.pop %v1312
    %vm1316 = vweird.f32 %v909
    %v1317 = vadd.s32 %v1313, 3
    %v1318 = vand.u32 %v1317, 3
    %vm1319 = vcmp.lt.s32.totalorder %v1318, 2
    %vm1320 = vcmp.eq.s32.totalorder %v1318, 0
    %v1321 = vxor.u32 %v1315, 2147483648
    %v1322 = vsel %vm1320, %v1314, %v1321
    %vm1323 = vcmp.eq.s32.totalorder %v1318, 2
    %v1324 = vxor.u32 %v1314, 2147483648
    %v1325 = vsel %vm1323, %v1324, %v1315
    %v1326 = vsel %vm1319, %v1322, %v1325
    %v1327 = vsel %vm1316, nan, %v1326
    %v1328 = vmul.f32 %v894, 0.5
    %v1329 = vmul.f32 %v899, 0.5
    %v1330 = vmul.f32 %v904, 0.5
    %v1331 = vmul.f32 %v909, 0.5
    %v1332 = vmul.f32 %v894, 0.044715
    %v1333 = vmul.f32 %v899, 0.044715
    %v1334 = vmul.f32 %v904, 0.044715
    %v1335 = vmul.f32 %v909, 0.044715
    %v1336 = vmul.f32 %v1332, %v894
    %v1337 = vmul.f32 %v1333, %v899
    %v1338 = vmul.f32 %v1334, %v904
    %v1339 = vmul.f32 %v1335, %v909
    %v1340 = vmul.f32 %v1336, %v894
    %v1341 = vmul.f32 %v1337, %v899
    %v1342 = vmul.f32 %v1338, %v904
    %v1343 = vmul.f32 %v1339, %v909
    %v1344 = vadd.f32 %v894, %v1340
    %v1345 = vadd.f32 %v899, %v1341
    %v1346 = vadd.f32 %v904, %v1342
    %v1347 = vadd.f32 %v909, %v1343
    %v1348 = vmul.f32 %v1344, 0.7978846
    %v1349 = vmul.f32 %v1345, 0.7978846
    %v1350 = vmul.f32 %v1346, 0.7978846
    %v1351 = vmul.f32 %v1347, 0.7978846
    %v1352 = vtanh.pop %v1348
    %v1353 = vtanh.pop %v1349
    %v1354 = vtanh.pop %v1350
    %v1355 = vtanh.pop %v1351
    %v1356 = vadd.f32 %v1352, 1.0
    %v1357 = vadd.f32 %v1353, 1.0
    %v1358 = vadd.f32 %v1354, 1.0
    %v1359 = vadd.f32 %v1355, 1.0
    %v1360 = vmul.f32 %v1328, %v1356
    %v1361 = vmul.f32 %v1329, %v1357
    %v1362 = vmul.f32 %v1330, %v1358
    %v1363 = vmul.f32 %v1331, %v1359
    %v1364 = vsel %vm199, %v1015, %v1360
    %v1365 = vsel %vm200, %v1119, %v1361
    %v1366 = vsel %vm201, %v1223, %v1362
    %v1367 = vsel %vm202, %v1327, %v1363
    %s1368 = scalar_lea.vmem %s3, 64
    %v1369 = vld [vmem:[%s1368] sm:$0xff]
    %v1370 = vld [vmem:[%s1368 + $0x8] sm:$0xff]
    %v1371 = vld [vmem:[%s1368 + $0x10] sm:$0xff]
    %v1372 = vld [vmem:[%s1368 + $0x18] sm:$0xff]
    %s1373 = scalar_lea.vmem %s4, 64
    %v1374 = vld [vmem:[%s1373] sm:$0xff]
    %v1375 = vld [vmem:[%s1373 + $0x8] sm:$0xff]
    %v1376 = vld [vmem:[%s1373 + $0x10] sm:$0xff]
    %v1377 = vld [vmem:[%s1373 + $0x18] sm:$0xff]
    %1379 = vset.pattern.permute.xlu0 0
    %1380 = vperm.xlu0 %1379, %v1374
    %v1381 = vpop.permute.xlu0 %1380
    %1384 = vset.pattern.permute.xlu0 0
    %1385 = vperm.xlu0 %1384, %v1375
    %v1386 = vpop.permute.xlu0 %1385
    %1389 = vset.pattern.permute.xlu0 0
    %1390 = vperm.xlu0 %1389, %v1376
    %v1391 = vpop.permute.xlu0 %1390
    %1394 = vset.pattern.permute.xlu0 0
    %1395 = vperm.xlu0 %1394, %v1377
    %v1396 = vpop.permute.xlu0 %1395
    %v1399 = vsel %vm231, %v1369, 0
    %v1402 = vsel %vm231, %v1370, 0
    %v1405 = vsel %vm231, %v1371, 0
    %v1408 = vsel %vm231, %v1372, 0
    %1410 = vmatprep.subr.mxu0 0.0
    %1411 = vmatpush1.msra.mxu0 %v1364
    %1412 = vmatprep.subr.mxu0 0.0
    %1413 = vmatpush1.msra.mxu0 %v1365
    %1414 = vmatprep.subr.mxu0 0.0
    %1415 = vmatpush1.msra.mxu0 %v1366
    %1416 = vmatprep.subr.mxu0 0.0
    %1417 = vmatpush1.msra.mxu0 %v1367
    %1418 = vmatprep.subr.mxu0 0.0
    %1419 = vmatpush1.msra.mxu0 0.0
    %1420 = vmatprep.subr.mxu0 0.0
    %1421 = vmatpush1.msra.mxu0 0.0
    %1422 = vmatprep.subr.mxu0 0.0
    %1423 = vmatpush1.msra.mxu0 0.0
    %1424 = vmatprep.subr.mxu0 0.0
    %1425 = vmatpush1.msra.mxu0 0.0
    %1426 = vmatprep.subr.mxu0 0.0
    %1427 = vmatpush1.msra.mxu0 0.0
    %1428 = vmatprep.subr.mxu0 0.0
    %1429 = vmatpush1.msra.mxu0 0.0
    %1430 = vmatprep.subr.mxu0 0.0
    %1431 = vmatpush1.msra.mxu0 0.0
    %1432 = vmatprep.subr.mxu0 0.0
    %1433 = vmatpush1.msra.mxu0 0.0
    %1434 = vmatprep.subr.mxu0 0.0
    %1435 = vmatpush1.msra.mxu0 0.0
    %1436 = vmatprep.subr.mxu0 0.0
    %1437 = vmatpush1.msra.mxu0 0.0
    %1438 = vmatprep.subr.mxu0 0.0
    %1439 = vmatpush1.msra.mxu0 0.0
    %1440 = vmatprep.subr.mxu0 0.0
    %1441 = vmatpush1.msra.mxu0 0.0
    %1442 = vmatprep.subr.mxu0 0.0
    %1443 = vmatpush1.msra.mxu0 0.0
    %1444 = vmatprep.subr.mxu0 0.0
    %1445 = vmatpush1.msra.mxu0 0.0
    %1446 = vmatprep.subr.mxu0 0.0
    %1447 = vmatpush1.msra.mxu0 0.0
    %1448 = vmatprep.subr.mxu0 0.0
    %1449 = vmatpush1.msra.mxu0 0.0
    %1450 = vmatprep.subr.mxu0 0.0
    %1451 = vmatpush1.msra.mxu0 0.0
    %1452 = vmatprep.subr.mxu0 0.0
    %1453 = vmatpush1.msra.mxu0 0.0
    %1454 = vmatprep.subr.mxu0 0.0
    %1455 = vmatpush1.msra.mxu0 0.0
    %1456 = vmatprep.subr.mxu0 0.0
    %1457 = vmatpush1.msra.mxu0 0.0
    %1458 = vmatprep.subr.mxu0 0.0
    %1459 = vmatpush1.msra.mxu0 0.0
    %1460 = vmatprep.subr.mxu0 0.0
    %1461 = vmatpush1.msra.mxu0 0.0
    %1462 = vmatprep.subr.mxu0 0.0
    %1463 = vmatpush1.msra.mxu0 0.0
    %1464 = vmatprep.subr.mxu0 0.0
    %1465 = vmatpush1.msra.mxu0 0.0
    %1466 = vmatprep.subr.mxu0 0.0
    %1467 = vmatpush1.msra.mxu0 0.0
    %1468 = vmatprep.subr.mxu0 0.0
    %1469 = vmatpush1.msra.mxu0 0.0
    %1470 = vmatprep.subr.mxu0 0.0
    %1471 = vmatpush1.msra.mxu0 0.0
    %1472 = vmatprep.subr.mxu0 0.0
    %1473 = vmatpush1.msra.mxu0 0.0
    %1474 = vmatprep.mubr.f32.mxu0 0.0
    %1475 = vmatmul.mubr.f32.gmra.mrb[0].mxu0 %v1399
    %v1476 = vpop.f32.mrb[0].mxu0
    %v1477 = vadd.f32 %v1381, %v1476
    %v1478 = vpop.f32.mrb[0].mxu0
    %1479 = vmatprep.mubr.f32.mxu0 0.0
    %1480 = vmatmul.mubr.f32.gmra.mrb[0].mxu0 %v1402
    %v1481 = vpop.f32.mrb[0].mxu0
    %v1482 = vadd.f32 %v1386, %v1481
    %v1483 = vpop.f32.mrb[0].mxu0
    %1484 = vmatprep.mubr.f32.mxu0 0.0
    %1485 = vmatmul.mubr.f32.gmra.mrb[0].mxu0 %v1405
    %v1486 = vpop.f32.mrb[0].mxu0
    %v1487 = vadd.f32 %v1391, %v1486
    %v1488 = vpop.f32.mrb[0].mxu0
    %1489 = vmatprep.mubr.f32.mxu0 0.0
    %1490 = vmatmul.mubr.f32.gmra.mrb[0].mxu0 %v1408
    %v1491 = vpop.f32.mrb[0].mxu0
    %v1492 = vadd.f32 %v1396, %v1491
    %v1493 = vpop.f32.mrb[0].mxu0
    %1494 = vdwg.mxu0
    %v1495 = vand.u32 2147483647, %v1477
    %vm1496 = vcmp.le.f32.partialorder %v1495, 0.7853982
    %vm1497 = vcmp.lt.s32.totalorder %v1477, 0
    %v1498 = vand.u32 %v1477, 2139095040
    %v1499 = vshrl.u32 %v1498, 23
    %v1500 = vsub.s32 %v1499, 127
    %v1501 = vand.u32 2147483647, %v1477
    %v1502 = vand.u32 %v1501, 8388607
    %v1503 = vor.u32 %v1502, 8388608
    %v1504 = vsub.s32 0, %v1503
    %v1505 = vadd.s32 %v1500, 1
    %vm1506 = vcmp.gt.s32.totalorder %v1505, 0
    %v1507 = vsel %vm1506, %v1505, 0
    %v1508 = vshrl.u32 %v1507, 5
    %v1509 = vand.u32 %v1507, 31
    %v1510 = vsub.s32 32, %v1509
    %v1511 = vshrl.u32 683565275, %v1510
    %v1512 = vshll.u32 683565275, %v1509
    %v1513 = vshrl.u32 2475754826, %v1510
    %v1514 = vor.u32 %v1512, %v1513
    %v1515 = vshll.u32 2475754826, %v1509
    %v1516 = vshrl.u32 2131351028, %v1510
    %v1517 = vor.u32 %v1515, %v1516
    %v1518 = vshll.u32 2131351028, %v1509
    %v1519 = vshrl.u32 2102212464, %v1510
    %v1520 = vor.u32 %v1518, %v1519
    %v1521 = vshll.u32 2102212464, %v1509
    %v1522 = vshrl.u32 920167782, %v1510
    %v1523 = vor.u32 %v1521, %v1522
    %v1524 = vshll.u32 920167782, %v1509
    %v1525 = vshrl.u32 1326507024, %v1510
    %v1526 = vor.u32 %v1524, %v1525
    %vm1527 = vcmp.lt.s32.totalorder %v1508, 1
    %vm1528 = vcmp.lt.s32.totalorder %v1508, 2
    %vm1529 = vcmp.lt.s32.totalorder %v1508, 3
    %vm1530 = vcmp.lt.s32.totalorder %v1508, 4
    %v1531 = vsel %vm1527, %v1511, %v1514
    %v1532 = vsel %vm1530, %v1520, 2102212464
    %v1533 = vsel %vm1529, %v1517, %v1532
    %v1534 = vsel %vm1528, %v1531, %v1533
    %v1535 = vsel %vm1527, %v1514, %v1517
    %v1536 = vsel %vm1530, %v1523, 920167782
    %v1537 = vsel %vm1529, %v1520, %v1536
    %v1538 = vsel %vm1528, %v1535, %v1537
    %v1539 = vsel %vm1527, %v1517, %v1520
    %v1540 = vsel %vm1530, %v1526, 1326507024
    %v1541 = vsel %vm1529, %v1523, %v1540
    %v1542 = vsel %vm1528, %v1539, %v1541
    %v1543 = vshll.u32 %v1503, 8
    %v1544 = vmul.u32.u64.compose %v1543, %v1542
    %v1545 = vextract.low.u32 %v1544
    %v1546 = vextract.high.u32 %v1544
    %v1547 = vmul.u32.u64.compose %v1543, %v1538
    %v1548 = vextract.low.u32 %v1547
    %v1549 = vextract.high.u32 %v1547
    %v1550 = vmul.u32 %v1543, %v1534
    %v1551 = vadd.s32 %v1546, %v1548
    %vm1552 = vc.u32 %v1546, %v1548
    %v1553 = vadd.s32 %v1549, 1
    %v1554 = vsel %vm1552, %v1553, %v1549
    %v1555 = vadd.s32 %v1550, %v1554
    %v1556 = vadd.s32 %v1555, 536870912
    %v1557 = vshrl.u32 %v1556, 30
    %v1558 = vshll.u32 %v1557, 30
    %v1559 = vsub.s32 %v1555, %v1558
    %vm1560 = vcmp.lt.s32.totalorder %v1559, 0
    %v1561 = vsub.s32 0, %v1559
    %v1562 = vsel %vm1560, %v1561, %v1559
    %v1563 = vclz %v1562
    %v1564 = vsub.s32 %v1563, 2
    %vm1565 = vcmp.gt.s32.totalorder 0, %v1564
    %v1566 = vsel %vm1565, 0, %v1564
    %v1567 = vsub.s32 32, %v1566
    %v1568 = vshll.u32 %v1559, %v1566
    %v1569 = vshrl.u32 %v1551, %v1567
    %v1570 = vor.u32 %v1568, %v1569
    %v1571 = vsub.s32 4294967266, %v1566
    %v1572 = vadd.s32 %v1571, 127
    %v1573 = vshll.u32 %v1572, 23
    %v1574 = vor.u32 4788187, %v1573
    %v1575 = vand.u32 2147483647, %v1574
    %v1577 = vcvt.s32.f32 %v1570
    %v1578 = vmul.f32 %v1577, %v1575
    %v1579 = vxor.u32 %v1578, 2147483648
    %v1580 = vsel %vm1497, %v1579, %v1578
    %v1581 = vsub.s32 4, %v1557
    %v1582 = vsel %vm1497, %v1581, %v1557
    %v1583 = vsel %vm1496, %v1477, %v1580
    %v1584 = vsel %vm1496, 0, %v1582
    %v1585 = vcosq.f32.pop %v1583
    %v1586 = vsinq.f32.pop %v1583
    %vm1587 = vweird.f32 %v1477
    %v1588 = vadd.s32 %v1584, 3
    %v1589 = vand.u32 %v1588, 3
    %vm1590 = vcmp.lt.s32.totalorder %v1589, 2
    %vm1591 = vcmp.eq.s32.totalorder %v1589, 0
    %v1592 = vxor.u32 %v1586, 2147483648
    %v1593 = vsel %vm1591, %v1585, %v1592
    %vm1594 = vcmp.eq.s32.totalorder %v1589, 2
    %v1595 = vxor.u32 %v1585, 2147483648
    %v1596 = vsel %vm1594, %v1595, %v1586
    %v1597 = vsel %vm1590, %v1593, %v1596
    %v1598 = vsel %vm1587, nan, %v1597
    %v1599 = vand.u32 2147483647, %v1482
    %vm1600 = vcmp.le.f32.partialorder %v1599, 0.7853982
    %vm1601 = vcmp.lt.s32.totalorder %v1482, 0
    %v1602 = vand.u32 %v1482, 2139095040
    %v1603 = vshrl.u32 %v1602, 23
    %v1604 = vsub.s32 %v1603, 127
    %v1605 = vand.u32 2147483647, %v1482
    %v1606 = vand.u32 %v1605, 8388607
    %v1607 = vor.u32 %v1606, 8388608
    %v1608 = vsub.s32 0, %v1607
    %v1609 = vadd.s32 %v1604, 1
    %vm1610 = vcmp.gt.s32.totalorder %v1609, 0
    %v1611 = vsel %vm1610, %v1609, 0
    %v1612 = vshrl.u32 %v1611, 5
    %v1613 = vand.u32 %v1611, 31
    %v1614 = vsub.s32 32, %v1613
    %v1615 = vshrl.u32 683565275, %v1614
    %v1616 = vshll.u32 683565275, %v1613
    %v1617 = vshrl.u32 2475754826, %v1614
    %v1618 = vor.u32 %v1616, %v1617
    %v1619 = vshll.u32 2475754826, %v1613
    %v1620 = vshrl.u32 2131351028, %v1614
    %v1621 = vor.u32 %v1619, %v1620
    %v1622 = vshll.u32 2131351028, %v1613
    %v1623 = vshrl.u32 2102212464, %v1614
    %v1624 = vor.u32 %v1622, %v1623
    %v1625 = vshll.u32 2102212464, %v1613
    %v1626 = vshrl.u32 920167782, %v1614
    %v1627 = vor.u32 %v1625, %v1626
    %v1628 = vshll.u32 920167782, %v1613
    %v1629 = vshrl.u32 1326507024, %v1614
    %v1630 = vor.u32 %v1628, %v1629
    %vm1631 = vcmp.lt.s32.totalorder %v1612, 1
    %vm1632 = vcmp.lt.s32.totalorder %v1612, 2
    %vm1633 = vcmp.lt.s32.totalorder %v1612, 3
    %vm1634 = vcmp.lt.s32.totalorder %v1612, 4
    %v1635 = vsel %vm1631, %v1615, %v1618
    %v1636 = vsel %vm1634, %v1624, 2102212464
    %v1637 = vsel %vm1633, %v1621, %v1636
    %v1638 = vsel %vm1632, %v1635, %v1637
    %v1639 = vsel %vm1631, %v1618, %v1621
    %v1640 = vsel %vm1634, %v1627, 920167782
    %v1641 = vsel %vm1633, %v1624, %v1640
    %v1642 = vsel %vm1632, %v1639, %v1641
    %v1643 = vsel %vm1631, %v1621, %v1624
    %v1644 = vsel %vm1634, %v1630, 1326507024
    %v1645 = vsel %vm1633, %v1627, %v1644
    %v1646 = vsel %vm1632, %v1643, %v1645
    %v1647 = vshll.u32 %v1607, 8
    %v1648 = vmul.u32.u64.compose %v1647, %v1646
    %v1649 = vextract.low.u32 %v1648
    %v1650 = vextract.high.u32 %v1648
    %v1651 = vmul.u32.u64.compose %v1647, %v1642
    %v1652 = vextract.low.u32 %v1651
    %v1653 = vextract.high.u32 %v1651
    %v1654 = vmul.u32 %v1647, %v1638
    %v1655 = vadd.s32 %v1650, %v1652
    %vm1656 = vc.u32 %v1650, %v1652
    %v1657 = vadd.s32 %v1653, 1
    %v1658 = vsel %vm1656, %v1657, %v1653
    %v1659 = vadd.s32 %v1654, %v1658
    %v1660 = vadd.s32 %v1659, 536870912
    %v1661 = vshrl.u32 %v1660, 30
    %v1662 = vshll.u32 %v1661, 30
    %v1663 = vsub.s32 %v1659, %v1662
    %vm1664 = vcmp.lt.s32.totalorder %v1663, 0
    %v1665 = vsub.s32 0, %v1663
    %v1666 = vsel %vm1664, %v1665, %v1663
    %v1667 = vclz %v1666
    %v1668 = vsub.s32 %v1667, 2
    %vm1669 = vcmp.gt.s32.totalorder 0, %v1668
    %v1670 = vsel %vm1669, 0, %v1668
    %v1671 = vsub.s32 32, %v1670
    %v1672 = vshll.u32 %v1663, %v1670
    %v1673 = vshrl.u32 %v1655, %v1671
    %v1674 = vor.u32 %v1672, %v1673
    %v1675 = vsub.s32 4294967266, %v1670
    %v1676 = vadd.s32 %v1675, 127
    %v1677 = vshll.u32 %v1676, 23
    %v1678 = vor.u32 4788187, %v1677
    %v1679 = vand.u32 2147483647, %v1678
    %v1681 = vcvt.s32.f32 %v1674
    %v1682 = vmul.f32 %v1681, %v1679
    %v1683 = vxor.u32 %v1682, 2147483648
    %v1684 = vsel %vm1601, %v1683, %v1682
    %v1685 = vsub.s32 4, %v1661
    %v1686 = vsel %vm1601, %v1685, %v1661
    %v1687 = vsel %vm1600, %v1482, %v1684
    %v1688 = vsel %vm1600, 0, %v1686
    %v1689 = vcosq.f32.pop %v1687
    %v1690 = vsinq.f32.pop %v1687
    %vm1691 = vweird.f32 %v1482
    %v1692 = vadd.s32 %v1688, 3
    %v1693 = vand.u32 %v1692, 3
    %vm1694 = vcmp.lt.s32.totalorder %v1693, 2
    %vm1695 = vcmp.eq.s32.totalorder %v1693, 0
    %v1696 = vxor.u32 %v1690, 2147483648
    %v1697 = vsel %vm1695, %v1689, %v1696
    %vm1698 = vcmp.eq.s32.totalorder %v1693, 2
    %v1699 = vxor.u32 %v1689, 2147483648
    %v1700 = vsel %vm1698, %v1699, %v1690
    %v1701 = vsel %vm1694, %v1697, %v1700
    %v1702 = vsel %vm1691, nan, %v1701
    %v1703 = vand.u32 2147483647, %v1487
    %vm1704 = vcmp.le.f32.partialorder %v1703, 0.7853982
    %vm1705 = vcmp.lt.s32.totalorder %v1487, 0
    %v1706 = vand.u32 %v1487, 2139095040
    %v1707 = vshrl.u32 %v1706, 23
    %v1708 = vsub.s32 %v1707, 127
    %v1709 = vand.u32 2147483647, %v1487
    %v1710 = vand.u32 %v1709, 8388607
    %v1711 = vor.u32 %v1710, 8388608
    %v1712 = vsub.s32 0, %v1711
    %v1713 = vadd.s32 %v1708, 1
    %vm1714 = vcmp.gt.s32.totalorder %v1713, 0
    %v1715 = vsel %vm1714, %v1713, 0
    %v1716 = vshrl.u32 %v1715, 5
    %v1717 = vand.u32 %v1715, 31
    %v1718 = vsub.s32 32, %v1717
    %v1719 = vshrl.u32 683565275, %v1718
    %v1720 = vshll.u32 683565275, %v1717
    %v1721 = vshrl.u32 2475754826, %v1718
    %v1722 = vor.u32 %v1720, %v1721
    %v1723 = vshll.u32 2475754826, %v1717
    %v1724 = vshrl.u32 2131351028, %v1718
    %v1725 = vor.u32 %v1723, %v1724
    %v1726 = vshll.u32 2131351028, %v1717
    %v1727 = vshrl.u32 2102212464, %v1718
    %v1728 = vor.u32 %v1726, %v1727
    %v1729 = vshll.u32 2102212464, %v1717
    %v1730 = vshrl.u32 920167782, %v1718
    %v1731 = vor.u32 %v1729, %v1730
    %v1732 = vshll.u32 920167782, %v1717
    %v1733 = vshrl.u32 1326507024, %v1718
    %v1734 = vor.u32 %v1732, %v1733
    %vm1735 = vcmp.lt.s32.totalorder %v1716, 1
    %vm1736 = vcmp.lt.s32.totalorder %v1716, 2
    %vm1737 = vcmp.lt.s32.totalorder %v1716, 3
    %vm1738 = vcmp.lt.s32.totalorder %v1716, 4
    %v1739 = vsel %vm1735, %v1719, %v1722
    %v1740 = vsel %vm1738, %v1728, 2102212464
    %v1741 = vsel %vm1737, %v1725, %v1740
    %v1742 = vsel %vm1736, %v1739, %v1741
    %v1743 = vsel %vm1735, %v1722, %v1725
    %v1744 = vsel %vm1738, %v1731, 920167782
    %v1745 = vsel %vm1737, %v1728, %v1744
    %v1746 = vsel %vm1736, %v1743, %v1745
    %v1747 = vsel %vm1735, %v1725, %v1728
    %v1748 = vsel %vm1738, %v1734, 1326507024
    %v1749 = vsel %vm1737, %v1731, %v1748
    %v1750 = vsel %vm1736, %v1747, %v1749
    %v1751 = vshll.u32 %v1711, 8
    %v1752 = vmul.u32.u64.compose %v1751, %v1750
    %v1753 = vextract.low.u32 %v1752
    %v1754 = vextract.high.u32 %v1752
    %v1755 = vmul.u32.u64.compose %v1751, %v1746
    %v1756 = vextract.low.u32 %v1755
    %v1757 = vextract.high.u32 %v1755
    %v1758 = vmul.u32 %v1751, %v1742
    %v1759 = vadd.s32 %v1754, %v1756
    %vm1760 = vc.u32 %v1754, %v1756
    %v1761 = vadd.s32 %v1757, 1
    %v1762 = vsel %vm1760, %v1761, %v1757
    %v1763 = vadd.s32 %v1758, %v1762
    %v1764 = vadd.s32 %v1763, 536870912
    %v1765 = vshrl.u32 %v1764, 30
    %v1766 = vshll.u32 %v1765, 30
    %v1767 = vsub.s32 %v1763, %v1766
    %vm1768 = vcmp.lt.s32.totalorder %v1767, 0
    %v1769 = vsub.s32 0, %v1767
    %v1770 = vsel %vm1768, %v1769, %v1767
    %v1771 = vclz %v1770
    %v1772 = vsub.s32 %v1771, 2
    %vm1773 = vcmp.gt.s32.totalorder 0, %v1772
    %v1774 = vsel %vm1773, 0, %v1772
    %v1775 = vsub.s32 32, %v1774
    %v1776 = vshll.u32 %v1767, %v1774
    %v1777 = vshrl.u32 %v1759, %v1775
    %v1778 = vor.u32 %v1776, %v1777
    %v1779 = vsub.s32 4294967266, %v1774
    %v1780 = vadd.s32 %v1779, 127
    %v1781 = vshll.u32 %v1780, 23
    %v1782 = vor.u32 4788187, %v1781
    %v1783 = vand.u32 2147483647, %v1782
    %v1785 = vcvt.s32.f32 %v1778
    %v1786 = vmul.f32 %v1785, %v1783
    %v1787 = vxor.u32 %v1786, 2147483648
    %v1788 = vsel %vm1705, %v1787, %v1786
    %v1789 = vsub.s32 4, %v1765
    %v1790 = vsel %vm1705, %v1789, %v1765
    %v1791 = vsel %vm1704, %v1487, %v1788
    %v1792 = vsel %vm1704, 0, %v1790
    %v1793 = vcosq.f32.pop %v1791
    %v1794 = vsinq.f32.pop %v1791
    %vm1795 = vweird.f32 %v1487
    %v1796 = vadd.s32 %v1792, 3
    %v1797 = vand.u32 %v1796, 3
    %vm1798 = vcmp.lt.s32.totalorder %v1797, 2
    %vm1799 = vcmp.eq.s32.totalorder %v1797, 0
    %v1800 = vxor.u32 %v1794, 2147483648
    %v1801 = vsel %vm1799, %v1793, %v1800
    %vm1802 = vcmp.eq.s32.totalorder %v1797, 2
    %v1803 = vxor.u32 %v1793, 2147483648
    %v1804 = vsel %vm1802, %v1803, %v1794
    %v1805 = vsel %vm1798, %v1801, %v1804
    %v1806 = vsel %vm1795, nan, %v1805
    %v1807 = vand.u32 2147483647, %v1492
    %vm1808 = vcmp.le.f32.partialorder %v1807, 0.7853982
    %vm1809 = vcmp.lt.s32.totalorder %v1492, 0
    %v1810 = vand.u32 %v1492, 2139095040
    %v1811 = vshrl.u32 %v1810, 23
    %v1812 = vsub.s32 %v1811, 127
    %v1813 = vand.u32 2147483647, %v1492
    %v1814 = vand.u32 %v1813, 8388607
    %v1815 = vor.u32 %v1814, 8388608
    %v1816 = vsub.s32 0, %v1815
    %v1817 = vadd.s32 %v1812, 1
    %vm1818 = vcmp.gt.s32.totalorder %v1817, 0
    %v1819 = vsel %vm1818, %v1817, 0
    %v1820 = vshrl.u32 %v1819, 5
    %v1821 = vand.u32 %v1819, 31
    %v1822 = vsub.s32 32, %v1821
    %v1823 = vshrl.u32 683565275, %v1822
    %v1824 = vshll.u32 683565275, %v1821
    %v1825 = vshrl.u32 2475754826, %v1822
    %v1826 = vor.u32 %v1824, %v1825
    %v1827 = vshll.u32 2475754826, %v1821
    %v1828 = vshrl.u32 2131351028, %v1822
    %v1829 = vor.u32 %v1827, %v1828
    %v1830 = vshll.u32 2131351028, %v1821
    %v1831 = vshrl.u32 2102212464, %v1822
    %v1832 = vor.u32 %v1830, %v1831
    %v1833 = vshll.u32 2102212464, %v1821
    %v1834 = vshrl.u32 920167782, %v1822
    %v1835 = vor.u32 %v1833, %v1834
    %v1836 = vshll.u32 920167782, %v1821
    %v1837 = vshrl.u32 1326507024, %v1822
    %v1838 = vor.u32 %v1836, %v1837
    %vm1839 = vcmp.lt.s32.totalorder %v1820, 1
    %vm1840 = vcmp.lt.s32.totalorder %v1820, 2
    %vm1841 = vcmp.lt.s32.totalorder %v1820, 3
    %vm1842 = vcmp.lt.s32.totalorder %v1820, 4
    %v1843 = vsel %vm1839, %v1823, %v1826
    %v1844 = vsel %vm1842, %v1832, 2102212464
    %v1845 = vsel %vm1841, %v1829, %v1844
    %v1846 = vsel %vm1840, %v1843, %v1845
    %v1847 = vsel %vm1839, %v1826, %v1829
    %v1848 = vsel %vm1842, %v1835, 920167782
    %v1849 = vsel %vm1841, %v1832, %v1848
    %v1850 = vsel %vm1840, %v1847, %v1849
    %v1851 = vsel %vm1839, %v1829, %v1832
    %v1852 = vsel %vm1842, %v1838, 1326507024
    %v1853 = vsel %vm1841, %v1835, %v1852
    %v1854 = vsel %vm1840, %v1851, %v1853
    %v1855 = vshll.u32 %v1815, 8
    %v1856 = vmul.u32.u64.compose %v1855, %v1854
    %v1857 = vextract.low.u32 %v1856
    %v1858 = vextract.high.u32 %v1856
    %v1859 = vmul.u32.u64.compose %v1855, %v1850
    %v1860 = vextract.low.u32 %v1859
    %v1861 = vextract.high.u32 %v1859
    %v1862 = vmul.u32 %v1855, %v1846
    %v1863 = vadd.s32 %v1858, %v1860
    %vm1864 = vc.u32 %v1858, %v1860
    %v1865 = vadd.s32 %v1861, 1
    %v1866 = vsel %vm1864, %v1865, %v1861
    %v1867 = vadd.s32 %v1862, %v1866
    %v1868 = vadd.s32 %v1867, 536870912
    %v1869 = vshrl.u32 %v1868, 30
    %v1870 = vshll.u32 %v1869, 30
    %v1871 = vsub.s32 %v1867, %v1870
    %vm1872 = vcmp.lt.s32.totalorder %v1871, 0
    %v1873 = vsub.s32 0, %v1871
    %v1874 = vsel %vm1872, %v1873, %v1871
    %v1875 = vclz %v1874
    %v1876 = vsub.s32 %v1875, 2
    %vm1877 = vcmp.gt.s32.totalorder 0, %v1876
    %v1878 = vsel %vm1877, 0, %v1876
    %v1879 = vsub.s32 32, %v1878
    %v1880 = vshll.u32 %v1871, %v1878
    %v1881 = vshrl.u32 %v1863, %v1879
    %v1882 = vor.u32 %v1880, %v1881
    %v1883 = vsub.s32 4294967266, %v1878
    %v1884 = vadd.s32 %v1883, 127
    %v1885 = vshll.u32 %v1884, 23
    %v1886 = vor.u32 4788187, %v1885
    %v1887 = vand.u32 2147483647, %v1886
    %v1889 = vcvt.s32.f32 %v1882
    %v1890 = vmul.f32 %v1889, %v1887
    %v1891 = vxor.u32 %v1890, 2147483648
    %v1892 = vsel %vm1809, %v1891, %v1890
    %v1893 = vsub.s32 4, %v1869
    %v1894 = vsel %vm1809, %v1893, %v1869
    %v1895 = vsel %vm1808, %v1492, %v1892
    %v1896 = vsel %vm1808, 0, %v1894
    %v1897 = vcosq.f32.pop %v1895
    %v1898 = vsinq.f32.pop %v1895
    %vm1899 = vweird.f32 %v1492
    %v1900 = vadd.s32 %v1896, 3
    %v1901 = vand.u32 %v1900, 3
    %vm1902 = vcmp.lt.s32.totalorder %v1901, 2
    %vm1903 = vcmp.eq.s32.totalorder %v1901, 0
    %v1904 = vxor.u32 %v1898, 2147483648
    %v1905 = vsel %vm1903, %v1897, %v1904
    %vm1906 = vcmp.eq.s32.totalorder %v1901, 2
    %v1907 = vxor.u32 %v1897, 2147483648
    %v1908 = vsel %vm1906, %v1907, %v1898
    %v1909 = vsel %vm1902, %v1905, %v1908
    %v1910 = vsel %vm1899, nan, %v1909
    %v1911 = vmul.f32 %v1477, 0.5
    %v1912 = vmul.f32 %v1482, 0.5
    %v1913 = vmul.f32 %v1487, 0.5
    %v1914 = vmul.f32 %v1492, 0.5
    %v1915 = vmul.f32 %v1477, 0.044715
    %v1916 = vmul.f32 %v1482, 0.044715
    %v1917 = vmul.f32 %v1487, 0.044715
    %v1918 = vmul.f32 %v1492, 0.044715
    %v1919 = vmul.f32 %v1915, %v1477
    %v1920 = vmul.f32 %v1916, %v1482
    %v1921 = vmul.f32 %v1917, %v1487
    %v1922 = vmul.f32 %v1918, %v1492
    %v1923 = vmul.f32 %v1919, %v1477
    %v1924 = vmul.f32 %v1920, %v1482
    %v1925 = vmul.f32 %v1921, %v1487
    %v1926 = vmul.f32 %v1922, %v1492
    %v1927 = vadd.f32 %v1477, %v1923
    %v1928 = vadd.f32 %v1482, %v1924
    %v1929 = vadd.f32 %v1487, %v1925
    %v1930 = vadd.f32 %v1492, %v1926
    %v1931 = vmul.f32 %v1927, 0.7978846
    %v1932 = vmul.f32 %v1928, 0.7978846
    %v1933 = vmul.f32 %v1929, 0.7978846
    %v1934 = vmul.f32 %v1930, 0.7978846
    %v1935 = vtanh.pop %v1931
    %v1936 = vtanh.pop %v1932
    %v1937 = vtanh.pop %v1933
    %v1938 = vtanh.pop %v1934
    %v1939 = vadd.f32 %v1935, 1.0
    %v1940 = vadd.f32 %v1936, 1.0
    %v1941 = vadd.f32 %v1937, 1.0
    %v1942 = vadd.f32 %v1938, 1.0
    %v1943 = vmul.f32 %v1911, %v1939
    %v1944 = vmul.f32 %v1912, %v1940
    %v1945 = vmul.f32 %v1913, %v1941
    %v1946 = vmul.f32 %v1914, %v1942
    %v1947 = vsel %vm199, %v1598, %v1943
    %v1948 = vsel %vm200, %v1702, %v1944
    %v1949 = vsel %vm201, %v1806, %v1945
    %v1950 = vsel %vm202, %v1910, %v1946
    %v1951 = vld [vmem:[%s5] sm:$0xff]
    %v1952 = vld [vmem:[%s5 + $0x8] sm:$0xf]
    %v1953 = vld [vmem:[%s6] sm:$0xff]
    %v1954 = vld [vmem:[%s6 + $0x8] sm:$0xf]
    %1956 = vset.pattern.permute.xlu0 0
    %1957 = vperm.xlu0 %1956, %v1953
    %v1958 = vpop.permute.xlu0 %1957
    %1961 = vset.pattern.permute.xlu0 0
    %1962 = vperm.xlu0 %1961, %v1954
    %v1963 = vpop.permute.xlu0 %1962
    %v1966 = vsel %vm231, %v1951, 0
    %v1969 = vsel %vm231, %v1952, 0
    %1971 = vmatprep.subr.mxu0 0.0
    %1972 = vmatpush1.msra.mxu0 %v1947
    %1973 = vmatprep.subr.mxu0 0.0
    %1974 = vmatpush1.msra.mxu0 %v1948
    %1975 = vmatprep.subr.mxu0 0.0
    %1976 = vmatpush1.msra.mxu0 %v1949
    %1977 = vmatprep.subr.mxu0 0.0
    %1978 = vmatpush1.msra.mxu0 %v1950
    %1979 = vmatprep.subr.mxu0 0.0
    %1980 = vmatpush1.msra.mxu0 0.0
    %1981 = vmatprep.subr.mxu0 0.0
    %1982 = vmatpush1.msra.mxu0 0.0
    %1983 = vmatprep.subr.mxu0 0.0
    %1984 = vmatpush1.msra.mxu0 0.0
    %1985 = vmatprep.subr.mxu0 0.0
    %1986 = vmatpush1.msra.mxu0 0.0
    %1987 = vmatprep.subr.mxu0 0.0
    %1988 = vmatpush1.msra.mxu0 0.0
    %1989 = vmatprep.subr.mxu0 0.0
    %1990 = vmatpush1.msra.mxu0 0.0
    %1991 = vmatprep.subr.mxu0 0.0
    %1992 = vmatpush1.msra.mxu0 0.0
    %1993 = vmatprep.subr.mxu0 0.0
    %1994 = vmatpush1.msra.mxu0 0.0
    %1995 = vmatprep.subr.mxu0 0.0
    %1996 = vmatpush1.msra.mxu0 0.0
    %1997 = vmatprep.subr.mxu0 0.0
    %1998 = vmatpush1.msra.mxu0 0.0
    %1999 = vmatprep.subr.mxu0 0.0
    %2000 = vmatpush1.msra.mxu0 0.0
    %2001 = vmatprep.subr.mxu0 0.0
    %2002 = vmatpush1.msra.mxu0 0.0
    %2003 = vmatprep.subr.mxu0 0.0
    %2004 = vmatpush1.msra.mxu0 0.0
    %2005 = vmatprep.subr.mxu0 0.0
    %2006 = vmatpush1.msra.mxu0 0.0
    %2007 = vmatprep.subr.mxu0 0.0
    %2008 = vmatpush1.msra.mxu0 0.0
    %2009 = vmatprep.subr.mxu0 0.0
    %2010 = vmatpush1.msra.mxu0 0.0
    %2011 = vmatprep.subr.mxu0 0.0
    %2012 = vmatpush1.msra.mxu0 0.0
    %2013 = vmatprep.subr.mxu0 0.0
    %2014 = vmatpush1.msra.mxu0 0.0
    %2015 = vmatprep.subr.mxu0 0.0
    %2016 = vmatpush1.msra.mxu0 0.0
    %2017 = vmatprep.subr.mxu0 0.0
    %2018 = vmatpush1.msra.mxu0 0.0
    %2019 = vmatprep.subr.mxu0 0.0
    %2020 = vmatpush1.msra.mxu0 0.0
    %2021 = vmatprep.subr.mxu0 0.0
    %2022 = vmatpush1.msra.mxu0 0.0
    %2023 = vmatprep.subr.mxu0 0.0
    %2024 = vmatpush1.msra.mxu0 0.0
    %2025 = vmatprep.subr.mxu0 0.0
    %2026 = vmatpush1.msra.mxu0 0.0
    %2027 = vmatprep.subr.mxu0 0.0
    %2028 = vmatpush1.msra.mxu0 0.0
    %2029 = vmatprep.subr.mxu0 0.0
    %2030 = vmatpush1.msra.mxu0 0.0
    %2031 = vmatprep.subr.mxu0 0.0
    %2032 = vmatpush1.msra.mxu0 0.0
    %2033 = vmatprep.subr.mxu0 0.0
    %2034 = vmatpush1.msra.mxu0 0.0
    %2035 = vmatprep.mubr.f32.mxu0 0.0
    %2036 = vmatmul.mubr.f32.gmra.mrb[0].mxu0 %v1966
    %v2037 = vpop.f32.mrb[0].mxu0
    %v2038 = vadd.f32 %v1958, %v2037
    %v2039 = vpop.f32.mrb[0].mxu0
    %2040 = vmatprep.mubr.f32.mxu0 0.0
    %2041 = vmatmul.mubr.f32.gmra.mrb[0].mxu0 %v1969
    %v2042 = vpop.f32.mrb[0].mxu0
    %v2043 = vadd.f32 %v1963, %v2042
    %v2044 = vpop.f32.mrb[0].mxu0
    %2045 = vdwg.mxu0
    %2046 = vst [vmem:[#allocation2] sm:$0xff] %v2038
    %2047 = vst [vmem:[#allocation2 + $0x8] sm:$0xf] %v2043
    // Predicated region
    $region30: #{tpu_custom_call.1} parent=1 // pred_check
      _
    $region31: #{tpu_custom_call.1} parent=1 // pred_check_branch
      %2049 = sbr.rel (0) target = $region33
    $region32: #{tpu_custom_call.1} parent=1 // pred_region
      %s2051 = ssub.s32 256, 256
      %2052 = vsyncadd [#allocation3], %s2051
      %s2053 = sshll.u32 [#allocation2], 4
      %s2054 = int_to_ptr.vmem [resolvable:$true] %s2053
      %2059 = dma.vmem_to_hbm [thread:$0]  %s2054, 256, %s7, [#allocation3], 128, 128, 8
    $region33: #{tpu_custom_call.1} parent=1 // pred_fallthru
      _
    // Predicated region
    $region34: #{tpu_custom_call.1} parent=1 // pred_check
      _
    $region35: #{tpu_custom_call.1} parent=1 // pred_check_branch
      %2061 = sbr.rel (0) target = $region37
    $region36: #{tpu_custom_call.1} parent=1 // pred_region
      %2062 = dma.done [#allocation3], 256
    $region37: #{tpu_custom_call.1} parent=1 // pred_fallthru
      _
    %2063 = vsyncpa [#allocation3], 1

</llo_original>
